<compile_context>
chip_gen: v5e
topology: v5e:2x2
jax: 0.10.0
libtpu: 0.0.40
codegen_flags: <defaults>
</compile_context>

<pallas_src>
import jax
import jax.numpy as jnp
from jax import lax
from jax.experimental import pallas as pl
from jax.experimental.pallas import tpu as pltpu


def _round_up(x, m):
    return (x + m - 1) // m * m


def ms_txt_gru_kernel(x_ref, len_ref, wi_ref, wh_ref, ball_ref, bhn_ref,
                      out_ref, gi_ref):
    """Fused 1-layer GRU (torch gate order r,z,n) + length-masked mean pooling.

    x_ref   : (T, TB, Dp)    bf16  time-major embeddings (zero-padded)
    len_ref : (TB, 1)        int32 valid lengths
    wi_ref  : (Dp, 3*Hp)     bf16  fused input->hidden weights  [r|z|n]
    wh_ref  : (Hp, 3*Hp)     bf16  fused hidden->hidden weights [r|z|n]
    ball_ref: (1, 3*Hp)      f32   fused bias [bir+bhr | biz+bhz | bin]
    bhn_ref : (1, Hp)        f32   hidden bias of the n gate (inside r*(...))
    out_ref : (TB, Hp)       f32   length-masked mean of GRU outputs
    gi_ref  : (T, TB, 3*Hp)  f32   VMEM scratch: precomputed input projections
    """
    T, TB, Dp = x_ref.shape
    H3 = wh_ref.shape[1]
    Hp = H3 // 3

    # ---- hoisted input projection: one (T*TB, Dp) x (Dp, 3Hp) MXU matmul ----
    x_all = x_ref[...].reshape(T * TB, Dp)                       # bf16
    gi = jnp.dot(x_all, wi_ref[...], preferred_element_type=jnp.float32)
    gi_ref[...] = (gi + ball_ref[...]).reshape(T, TB, H3)

    lengths_i = len_ref[...]                                     # (TB, 1) int32
    inv_len = pl.reciprocal(
        jnp.maximum(lengths_i.astype(jnp.float32), 1.0), approx=True)

    wh = wh_ref[...]                                             # (Hp, 3Hp) bf16
    bhn = bhn_ref[...]                                           # (1, Hp)  f32

    h = jnp.zeros((TB, Hp), jnp.float32)
    acc = jnp.zeros((TB, Hp), jnp.float32)

    # T is small & static -> full unroll (straight-line code), letting the LLO
    # scheduler overlap step t's VPU/EUP gate math with step t+1's MXU push.
    # For large T switch to lax.fori_loop(..., unroll=k) over a VMEM-carried h.
    for t in range(T):
        gi_t = gi_ref[t]                                         # (TB, 3Hp) f32
        gh = jnp.dot(h.astype(jnp.bfloat16), wh,
                     preferred_element_type=jnp.float32)         # (TB, 3Hp)
        r = jax.nn.sigmoid(gi_t[:, :Hp] + gh[:, :Hp])
        z = jax.nn.sigmoid(gi_t[:, Hp:2 * Hp] + gh[:, Hp:2 * Hp])
        n = jnp.tanh(gi_t[:, 2 * Hp:] + r * (gh[:, 2 * Hp:] + bhn))
        h_new = (1.0 - z) * n + z * h
        # pack_padded_sequence semantics: steps t >= length contribute nothing
        # and do not advance the hidden state.
        valid = t < lengths_i                                    # (TB, 1) bool
        acc = acc + jnp.where(valid, h_new, 0.0)
        h = jnp.where(valid, h_new, h)

    out_ref[...] = acc * inv_len                                 # full-lane store


def multi_scale_txt_encoder(x_emb_tbd, lengths, wi, wh, bi, bh,
                            w2v_feat, bow_feat, *, batch_tile=16):
    """MultiScaleTxtEncoder forward: concat(GRU-mean-pool, w2v, bow), dim=1.

    x_emb_tbd : (T, B, D) f32 time-major token embeddings
    lengths   : (B, 1) int32
    wi, wh    : (3, D, H), (3, H, H) f32 — torch gate order r,z,n, stored for x @ W
    bi, bh    : (3, 1, H) f32
    """
    T, B, D = x_emb_tbd.shape
    H = wh.shape[2]

    # pad to vreg tiles; batch_tile is a multiple of 16 so the bf16 input block
    # stays sublane-pack aligned even when the batch is tiled.
    Dp = _round_up(D, 128)
    Hp = _round_up(H, 128)
    Bp = _round_up(B, batch_tile)
    H3p = 3 * Hp

    # --- pad & fuse parameters (zero padding keeps padded units exactly inert) ---
    x_p = jnp.zeros((T, Bp, Dp), jnp.float32).at[:, :B, :D].set(x_emb_tbd)
    x_p = x_p.astype(jnp.bfloat16)
    # padded batch rows get length 1 so the mean divisor is never 0.
    len_p = jnp.ones((Bp, 1), jnp.int32).at[:B, :].set(lengths)

    def fuse(w3, rows, rows_p):
        out = jnp.zeros((rows_p, H3p), jnp.float32)
        for g in range(3):
            out = out.at[:rows, g * Hp:g * Hp + H].set(w3[g])
        return out

    wi_f = fuse(wi, D, Dp).astype(jnp.bfloat16)
    wh_f = fuse(wh, H, Hp).astype(jnp.bfloat16)

    b_all = jnp.zeros((1, H3p), jnp.float32)
    b_all = b_all.at[:, 0 * Hp:0 * Hp + H].set(bi[0] + bh[0])   # r: bi+bh folded
    b_all = b_all.at[:, 1 * Hp:1 * Hp + H].set(bi[1] + bh[1])   # z: bi+bh folded
    b_all = b_all.at[:, 2 * Hp:2 * Hp + H].set(bi[2])           # n: input bias only
    bhn = jnp.zeros((1, Hp), jnp.float32).at[:, :H].set(bh[2])  # n: hidden bias

    grid = (Bp // batch_tile,)

    flops = 2 * T * Bp * Dp * H3p + 2 * T * Bp * Hp * H3p
    transcendentals = 3 * T * Bp * Hp
    bytes_accessed = (x_p.size * 2 + wi_f.size * 2 + wh_f.size * 2
                      + (b_all.size + bhn.size + Bp * Hp) * 4 + len_p.size * 4)

    rnn_padded = pl.pallas_call(
        ms_txt_gru_kernel,
        out_shape=jax.ShapeDtypeStruct((Bp, Hp), jnp.float32),
        grid_spec=pltpu.PrefetchScalarGridSpec(
            num_scalar_prefetch=0,
            grid=grid,
            in_specs=[
                pl.BlockSpec((T, batch_tile, Dp), lambda b: (0, b, 0)),  # x (batch tile)
                pl.BlockSpec((batch_tile, 1), lambda b: (b, 0)),         # lengths
                pl.BlockSpec((Dp, H3p), lambda b: (0, 0)),               # Wi fused (resident)
                pl.BlockSpec((Hp, H3p), lambda b: (0, 0)),               # Wh fused (resident)
                pl.BlockSpec((1, H3p), lambda b: (0, 0)),                # fused bias
                pl.BlockSpec((1, Hp), lambda b: (0, 0)),                 # bhn
            ],
            out_specs=pl.BlockSpec((batch_tile, Hp), lambda b: (b, 0)),
            scratch_shapes=[pltpu.VMEM((T, batch_tile, H3p), jnp.float32)],
        ),
        compiler_params=pltpu.CompilerParams(
            dimension_semantics=("parallel",),
            vmem_limit_bytes=32 * 1024 * 1024,
        ),
        cost_estimate=pl.CostEstimate(
            flops=flops,
            transcendentals=transcendentals,
            bytes_accessed=bytes_accessed),
    )(x_p, len_p, wi_f, wh_f, b_all, bhn)

    rnn_mean = rnn_padded[:B, :H]
    # concat(rnn, w2v, bow) kept outside the kernel: the kernel output stays one
    # full-128-lane slab and the w2v/bow tensors are not round-tripped through
    # VMEM just to be copied.
    return jnp.concatenate([rnn_mean, w2v_feat, bow_feat], axis=1)


def reference_jax(x_emb_tbd, lengths, wi, wh, bi, bh, w2v_feat, bow_feat):
    """Pure-JAX f32 reference of the same forward pass (torch GRU semantics)."""
    T, B, D = x_emb_tbd.shape
    H = wh.shape[2]
    lengths_f = lengths.astype(jnp.float32)

    def step(carry, x_t_and_t):
        h, acc = carry
        x_t, t = x_t_and_t
        r = jax.nn.sigmoid(x_t @ wi[0] + bi[0] + h @ wh[0] + bh[0])
        z = jax.nn.sigmoid(x_t @ wi[1] + bi[1] + h @ wh[1] + bh[1])
        n = jnp.tanh(x_t @ wi[2] + bi[2] + r * (h @ wh[2] + bh[2]))
        h_new = (1.0 - z) * n + z * h
        mask = (t < lengths).astype(jnp.float32)
        acc = acc + mask * h_new
        h = mask * h_new + (1.0 - mask) * h
        return (h, acc), None

    h0 = jnp.zeros((B, H), jnp.float32)
    acc0 = jnp.zeros((B, H), jnp.float32)
    (_, acc), _ = lax.scan(step, (h0, acc0),
                           (x_emb_tbd, jnp.arange(T, dtype=jnp.int32)))
    rnn_mean = acc / lengths_f
    return jnp.concatenate([rnn_mean, w2v_feat, bow_feat], axis=1)


if __name__ == "__main__":
    # Small, deterministic config (stands in for `opt`):
    B, T = 4, 8          # batch of 4 captions, max 8 tokens
    V = 50               # vocab size
    WE = 32              # opt.we_dim
    H = 32               # opt.rnn_size (1 GRU layer, pooling='mean')
    DW2V = 16            # w2v feature dim
    DBOW = 16            # bow feature dim

    key = jax.random.PRNGKey(0)
    k_emb, k_ids, k_wi, k_wh, k_bi, k_bh, k_w2v, k_bow = jax.random.split(key, 8)

    # nn.Embedding(len(vocab), we_dim)
    emb_table = jax.random.normal(k_emb, (V, WE), jnp.float32) * 0.1
    token_ids = jax.random.randint(k_ids, (B, T), 0, V, jnp.int32)
    lengths = jnp.array([[8], [6], [4], [3]], jnp.int32)       # (B, 1) variable lengths

    # GRU parameters (torch gate order r,z,n), stored transposed for x @ W
    scale = 1.0 / jnp.sqrt(jnp.float32(H))
    wi = jax.random.uniform(k_wi, (3, WE, H), jnp.float32, -scale, scale)
    wh = jax.random.uniform(k_wh, (3, H, H), jnp.float32, -scale, scale)
    bi = jax.random.uniform(k_bi, (3, 1, H), jnp.float32, -scale, scale)
    bh = jax.random.uniform(k_bh, (3, 1, H), jnp.float32, -scale, scale)

    # TODO(synk): t2v_idx / t2v_w2v / t2v_bow are external text->vector vocabulary
    # encodings with no Pallas equivalent — their outputs are synthesized here.
    w2v_feat = jax.random.normal(k_w2v, (B, DW2V), jnp.float32)
    bow_feat = jax.random.normal(k_bow, (B, DBOW), jnp.float32)

    # Glue: embedding gather (B,T) -> (B,T,WE), then time-major (T,B,WE)
    x_emb = jnp.take(emb_table, token_ids, axis=0)              # (B, T, WE)
    x_emb_tbd = jnp.transpose(x_emb, (1, 0, 2))                 # (T, B, WE)

    out = multi_scale_txt_encoder(x_emb_tbd, lengths, wi, wh, bi, bh,
                                  w2v_feat, bow_feat)
    out = jax.block_until_ready(out)

    ref = reference_jax(x_emb_tbd, lengths, wi, wh, bi, bh, w2v_feat, bow_feat)
    assert out.shape == (B, H + DW2V + DBOW)
    # bf16 MXU operands + approx reciprocal -> tolerance loosened accordingly
    err = float(jnp.max(jnp.abs(out - ref)))
    assert jnp.allclose(out, ref, atol=1e-2, rtol=1e-2), err

    print("KERNEL_OK")
</pallas_src>

<mosaic_0001>
module attributes {stable_mosaic.version = 11 : i64} {
  func.func @ms_txt_gru_kernel(%arg0: i32, %arg1: memref<8x16x128xbf16, #tpu.memory_space<vmem>>, %arg2: memref<16x1xi32, #tpu.memory_space<vmem>>, %arg3: memref<128x384xbf16, #tpu.memory_space<vmem>>, %arg4: memref<128x384xbf16, #tpu.memory_space<vmem>>, %arg5: memref<1x384xf32, #tpu.memory_space<vmem>>, %arg6: memref<1x128xf32, #tpu.memory_space<vmem>>, %arg7: memref<16x128xf32, #tpu.memory_space<vmem>>, %arg8: memref<8x16x384xf32, #tpu.memory_space<vmem>>) attributes {dimension_semantics = [#tpu.dimension_semantics<parallel>], iteration_bounds = array<i64: 1>, scalar_prefetch = 0 : i64, scratch_operands = 1 : i64, tpu.core_type = #tpu.core_type<tc>, window_params = [{transform_indices = @transform_0, window_bounds = array<i64: 8, 16, 128>}, {transform_indices = @transform_1, window_bounds = array<i64: 16, 1>}, {pipeline_mode = #tpu.pipeline_mode<synchronous>, transform_indices = @transform_2, window_bounds = array<i64: 128, 384>}, {pipeline_mode = #tpu.pipeline_mode<synchronous>, transform_indices = @transform_3, window_bounds = array<i64: 128, 384>}, {pipeline_mode = #tpu.pipeline_mode<synchronous>, transform_indices = @transform_4, window_bounds = array<i64: 1, 384>}, {pipeline_mode = #tpu.pipeline_mode<synchronous>, transform_indices = @transform_5, window_bounds = array<i64: 1, 128>}, {transform_indices = @transform_6, window_bounds = array<i64: 16, 128>}]} {
    %c0 = arith.constant 0 : index
    %c0_0 = arith.constant 0 : index
    %c0_1 = arith.constant 0 : index
    %0 = vector.load %arg1[%c0, %c0_0, %c0_1] : memref<8x16x128xbf16, #tpu.memory_space<vmem>>, vector<8x16x128xbf16>
    %1 = vector.shape_cast %0 : vector<8x16x128xbf16> to vector<128x128xbf16>
    %c0_2 = arith.constant 0 : index
    %c0_3 = arith.constant 0 : index
    %2 = vector.load %arg3[%c0_2, %c0_3] : memref<128x384xbf16, #tpu.memory_space<vmem>>, vector<128x384xbf16>
    %cst = arith.constant dense<0.000000e+00> : vector<128x384xf32>
    %3 = tpu.matmul %1, %2, %cst {dimension_numbers = #tpu.dot_dimension_numbers<[1], [0], [0], [1], [0, 0, 1, 1], [], []>} : vector<128x128xbf16>, vector<128x384xbf16>, vector<128x384xf32> -> vector<128x384xf32>
    %c0_4 = arith.constant 0 : index
    %c0_5 = arith.constant 0 : index
    %4 = vector.load %arg5[%c0_4, %c0_5] : memref<1x384xf32, #tpu.memory_space<vmem>>, vector<1x384xf32>
    %5 = vector.broadcast %4 : vector<1x384xf32> to vector<128x384xf32>
    %6 = arith.addf %3, %5 : vector<128x384xf32>
    %7 = vector.shape_cast %6 : vector<128x384xf32> to vector<8x16x384xf32>
    %c0_6 = arith.constant 0 : index
    %c0_7 = arith.constant 0 : index
    %c0_8 = arith.constant 0 : index
    %8 = vector.load %arg8[%c0_6, %c0_7, %c0_8] : memref<8x16x384xf32, #tpu.memory_space<vmem>>, vector<8x16x384xf32>
    tpu.vector_store %arg8[%c0_6, %c0_7, %c0_8], %7 {strides = array<i32>} : memref<8x16x384xf32, #tpu.memory_space<vmem>>, vector<8x16x384xf32>,
    %c0_9 = arith.constant 0 : index
    %c0_10 = arith.constant 0 : index
    %9 = vector.load %arg2[%c0_9, %c0_10] : memref<16x1xi32, #tpu.memory_space<vmem>>, vector<16x1xi32>
    %10 = arith.sitofp %9 : vector<16x1xi32> to vector<16x1xf32>
    %cst_11 = arith.constant 1.000000e+00 : f32
    %11 = vector.broadcast %cst_11 : f32 to vector<16x1xf32>
    %12 = arith.maximumf %10, %11 : vector<16x1xf32>
    %13 = tpu.reciprocal %12 {approx = true} : vector<16x1xf32> -> vector<16x1xf32>
    %c0_12 = arith.constant 0 : index
    %c0_13 = arith.constant 0 : index
    %14 = vector.load %arg4[%c0_12, %c0_13] : memref<128x384xbf16, #tpu.memory_space<vmem>>, vector<128x384xbf16>
    %c0_14 = arith.constant 0 : index
    %c0_15 = arith.constant 0 : index
    %15 = vector.load %arg6[%c0_14, %c0_15] : memref<1x128xf32, #tpu.memory_space<vmem>>, vector<1x128xf32>
    %cst_16 = arith.constant 0.000000e+00 : f32
    %16 = vector.broadcast %cst_16 : f32 to vector<16x128xf32>
    %cst_17 = arith.constant 0.000000e+00 : f32
    %17 = vector.broadcast %cst_17 : f32 to vector<16x128xf32>
    %c0_18 = arith.constant 0 : index
    %c0_19 = arith.constant 0 : index
    %c0_20 = arith.constant 0 : index
    %18 = vector.load %arg8[%c0_18, %c0_19, %c0_20] : memref<8x16x384xf32, #tpu.memory_space<vmem>>, vector<1x16x384xf32>
    %19 = vector.shape_cast %18 : vector<1x16x384xf32> to vector<16x384xf32>
    %20 = arith.truncf %16 : vector<16x128xf32> to vector<16x128xbf16>
    %cst_21 = arith.constant dense<0.000000e+00> : vector<16x384xf32>
    %21 = tpu.matmul %20, %14, %cst_21 {dimension_numbers = #tpu.dot_dimension_numbers<[1], [0], [0], [1], [0, 0, 1, 1], [], []>} : vector<16x128xbf16>, vector<128x384xbf16>, vector<16x384xf32> -> vector<16x384xf32>
    %22 = vector.extract_strided_slice %19 {offsets = [0, 0], sizes = [16, 128], strides = [1, 1]} : vector<16x384xf32> to vector<16x128xf32>
    %23 = vector.extract_strided_slice %21 {offsets = [0, 0], sizes = [16, 128], strides = [1, 1]} : vector<16x384xf32> to vector<16x128xf32>
    %24 = arith.addf %22, %23 : vector<16x128xf32>
    %25 = arith.negf %24 : vector<16x128xf32>
    %26 = math.exp %25 : vector<16x128xf32>
    %cst_22 = arith.constant 1.000000e+00 : f32
    %27 = vector.broadcast %cst_22 : f32 to vector<16x128xf32>
    %28 = arith.addf %27, %26 : vector<16x128xf32>
    %29 = arith.divf %27, %28 : vector<16x128xf32>
    %30 = vector.extract_strided_slice %19 {offsets = [0, 128], sizes = [16, 128], strides = [1, 1]} : vector<16x384xf32> to vector<16x128xf32>
    %31 = vector.extract_strided_slice %21 {offsets = [0, 128], sizes = [16, 128], strides = [1, 1]} : vector<16x384xf32> to vector<16x128xf32>
    %32 = arith.addf %30, %31 : vector<16x128xf32>
    %33 = arith.negf %32 : vector<16x128xf32>
    %34 = math.exp %33 : vector<16x128xf32>
    %cst_23 = arith.constant 1.000000e+00 : f32
    %35 = vector.broadcast %cst_23 : f32 to vector<16x128xf32>
    %36 = arith.addf %35, %34 : vector<16x128xf32>
    %37 = arith.divf %35, %36 : vector<16x128xf32>
    %38 = vector.extract_strided_slice %19 {offsets = [0, 256], sizes = [16, 128], strides = [1, 1]} : vector<16x384xf32> to vector<16x128xf32>
    %39 = vector.extract_strided_slice %21 {offsets = [0, 256], sizes = [16, 128], strides = [1, 1]} : vector<16x384xf32> to vector<16x128xf32>
    %40 = vector.broadcast %15 : vector<1x128xf32> to vector<16x128xf32>
    %41 = arith.addf %39, %40 : vector<16x128xf32>
    %42 = arith.mulf %29, %41 : vector<16x128xf32>
    %43 = arith.addf %38, %42 : vector<16x128xf32>
    %44 = math.tanh %43 : vector<16x128xf32>
    %cst_24 = arith.constant 1.000000e+00 : f32
    %45 = vector.broadcast %cst_24 : f32 to vector<16x128xf32>
    %46 = arith.subf %45, %37 : vector<16x128xf32>
    %47 = arith.mulf %46, %44 : vector<16x128xf32>
    %48 = arith.mulf %37, %16 : vector<16x128xf32>
    %49 = arith.addf %47, %48 : vector<16x128xf32>
    %c0_i32 = arith.constant 0 : i32
    %50 = vector.broadcast %c0_i32 : i32 to vector<16x1xi32>
    %51 = arith.cmpi sgt, %9, %50 : vector<16x1xi32>
    %cst_25 = arith.constant 0.000000e+00 : f32
    %52 = vector.shape_cast %51 : vector<16x1xi1> to vector<16x1xi1>
    %53 = vector.broadcast %52 : vector<16x1xi1> to vector<16x128xi1>
    %54 = vector.broadcast %cst_25 : f32 to vector<16x128xf32>
    %55 = arith.select %53, %49, %54 : vector<16x128xi1>, vector<16x128xf32>
    %56 = arith.addf %17, %55 : vector<16x128xf32>
    %57 = vector.shape_cast %51 : vector<16x1xi1> to vector<16x1xi1>
    %58 = vector.broadcast %57 : vector<16x1xi1> to vector<16x128xi1>
    %59 = arith.select %58, %49, %16 : vector<16x128xi1>, vector<16x128xf32>
    %c1 = arith.constant 1 : index
    %c0_26 = arith.constant 0 : index
    %c0_27 = arith.constant 0 : index
    %60 = vector.load %arg8[%c1, %c0_26, %c0_27] : memref<8x16x384xf32, #tpu.memory_space<vmem>>, vector<1x16x384xf32>
    %61 = vector.shape_cast %60 : vector<1x16x384xf32> to vector<16x384xf32>
    %62 = arith.truncf %59 : vector<16x128xf32> to vector<16x128xbf16>
    %cst_28 = arith.constant dense<0.000000e+00> : vector<16x384xf32>
    %63 = tpu.matmul %62, %14, %cst_28 {dimension_numbers = #tpu.dot_dimension_numbers<[1], [0], [0], [1], [0, 0, 1, 1], [], []>} : vector<16x128xbf16>, vector<128x384xbf16>, vector<16x384xf32> -> vector<16x384xf32>
    %64 = vector.extract_strided_slice %61 {offsets = [0, 0], sizes = [16, 128], strides = [1, 1]} : vector<16x384xf32> to vector<16x128xf32>
    %65 = vector.extract_strided_slice %63 {offsets = [0, 0], sizes = [16, 128], strides = [1, 1]} : vector<16x384xf32> to vector<16x128xf32>
    %66 = arith.addf %64, %65 : vector<16x128xf32>
    %67 = arith.negf %66 : vector<16x128xf32>
    %68 = math.exp %67 : vector<16x128xf32>
    %cst_29 = arith.constant 1.000000e+00 : f32
    %69 = vector.broadcast %cst_29 : f32 to vector<16x128xf32>
    %70 = arith.addf %69, %68 : vector<16x128xf32>
    %71 = arith.divf %69, %70 : vector<16x128xf32>
    %72 = vector.extract_strided_slice %61 {offsets = [0, 128], sizes = [16, 128], strides = [1, 1]} : vector<16x384xf32> to vector<16x128xf32>
    %73 = vector.extract_strided_slice %63 {offsets = [0, 128], sizes = [16, 128], strides = [1, 1]} : vector<16x384xf32> to vector<16x128xf32>
    %74 = arith.addf %72, %73 : vector<16x128xf32>
    %75 = arith.negf %74 : vector<16x128xf32>
    %76 = math.exp %75 : vector<16x128xf32>
    %cst_30 = arith.constant 1.000000e+00 : f32
    %77 = vector.broadcast %cst_30 : f32 to vector<16x128xf32>
    %78 = arith.addf %77, %76 : vector<16x128xf32>
    %79 = arith.divf %77, %78 : vector<16x128xf32>
    %80 = vector.extract_strided_slice %61 {offsets = [0, 256], sizes = [16, 128], strides = [1, 1]} : vector<16x384xf32> to vector<16x128xf32>
    %81 = vector.extract_strided_slice %63 {offsets = [0, 256], sizes = [16, 128], strides = [1, 1]} : vector<16x384xf32> to vector<16x128xf32>
    %82 = vector.broadcast %15 : vector<1x128xf32> to vector<16x128xf32>
    %83 = arith.addf %81, %82 : vector<16x128xf32>
    %84 = arith.mulf %71, %83 : vector<16x128xf32>
    %85 = arith.addf %80, %84 : vector<16x128xf32>
    %86 = math.tanh %85 : vector<16x128xf32>
    %cst_31 = arith.constant 1.000000e+00 : f32
    %87 = vector.broadcast %cst_31 : f32 to vector<16x128xf32>
    %88 = arith.subf %87, %79 : vector<16x128xf32>
    %89 = arith.mulf %88, %86 : vector<16x128xf32>
    %90 = arith.mulf %79, %59 : vector<16x128xf32>
    %91 = arith.addf %89, %90 : vector<16x128xf32>
    %c1_i32 = arith.constant 1 : i32
    %92 = vector.broadcast %c1_i32 : i32 to vector<16x1xi32>
    %93 = arith.cmpi sgt, %9, %92 : vector<16x1xi32>
    %cst_32 = arith.constant 0.000000e+00 : f32
    %94 = vector.shape_cast %93 : vector<16x1xi1> to vector<16x1xi1>
    %95 = vector.broadcast %94 : vector<16x1xi1> to vector<16x128xi1>
    %96 = vector.broadcast %cst_32 : f32 to vector<16x128xf32>
    %97 = arith.select %95, %91, %96 : vector<16x128xi1>, vector<16x128xf32>
    %98 = arith.addf %56, %97 : vector<16x128xf32>
    %99 = vector.shape_cast %93 : vector<16x1xi1> to vector<16x1xi1>
    %100 = vector.broadcast %99 : vector<16x1xi1> to vector<16x128xi1>
    %101 = arith.select %100, %91, %59 : vector<16x128xi1>, vector<16x128xf32>
    %c2 = arith.constant 2 : index
    %c0_33 = arith.constant 0 : index
    %c0_34 = arith.constant 0 : index
    %102 = vector.load %arg8[%c2, %c0_33, %c0_34] : memref<8x16x384xf32, #tpu.memory_space<vmem>>, vector<1x16x384xf32>
    %103 = vector.shape_cast %102 : vector<1x16x384xf32> to vector<16x384xf32>
    %104 = arith.truncf %101 : vector<16x128xf32> to vector<16x128xbf16>
    %cst_35 = arith.constant dense<0.000000e+00> : vector<16x384xf32>
    %105 = tpu.matmul %104, %14, %cst_35 {dimension_numbers = #tpu.dot_dimension_numbers<[1], [0], [0], [1], [0, 0, 1, 1], [], []>} : vector<16x128xbf16>, vector<128x384xbf16>, vector<16x384xf32> -> vector<16x384xf32>
    %106 = vector.extract_strided_slice %103 {offsets = [0, 0], sizes = [16, 128], strides = [1, 1]} : vector<16x384xf32> to vector<16x128xf32>
    %107 = vector.extract_strided_slice %105 {offsets = [0, 0], sizes = [16, 128], strides = [1, 1]} : vector<16x384xf32> to vector<16x128xf32>
    %108 = arith.addf %106, %107 : vector<16x128xf32>
    %109 = arith.negf %108 : vector<16x128xf32>
    %110 = math.exp %109 : vector<16x128xf32>
    %cst_36 = arith.constant 1.000000e+00 : f32
    %111 = vector.broadcast %cst_36 : f32 to vector<16x128xf32>
    %112 = arith.addf %111, %110 : vector<16x128xf32>
    %113 = arith.divf %111, %112 : vector<16x128xf32>
    %114 = vector.extract_strided_slice %103 {offsets = [0, 128], sizes = [16, 128], strides = [1, 1]} : vector<16x384xf32> to vector<16x128xf32>
    %115 = vector.extract_strided_slice %105 {offsets = [0, 128], sizes = [16, 128], strides = [1, 1]} : vector<16x384xf32> to vector<16x128xf32>
    %116 = arith.addf %114, %115 : vector<16x128xf32>
    %117 = arith.negf %116 : vector<16x128xf32>
    %118 = math.exp %117 : vector<16x128xf32>
    %cst_37 = arith.constant 1.000000e+00 : f32
    %119 = vector.broadcast %cst_37 : f32 to vector<16x128xf32>
    %120 = arith.addf %119, %118 : vector<16x128xf32>
    %121 = arith.divf %119, %120 : vector<16x128xf32>
    %122 = vector.extract_strided_slice %103 {offsets = [0, 256], sizes = [16, 128], strides = [1, 1]} : vector<16x384xf32> to vector<16x128xf32>
    %123 = vector.extract_strided_slice %105 {offsets = [0, 256], sizes = [16, 128], strides = [1, 1]} : vector<16x384xf32> to vector<16x128xf32>
    %124 = vector.broadcast %15 : vector<1x128xf32> to vector<16x128xf32>
    %125 = arith.addf %123, %124 : vector<16x128xf32>
    %126 = arith.mulf %113, %125 : vector<16x128xf32>
    %127 = arith.addf %122, %126 : vector<16x128xf32>
    %128 = math.tanh %127 : vector<16x128xf32>
    %cst_38 = arith.constant 1.000000e+00 : f32
    %129 = vector.broadcast %cst_38 : f32 to vector<16x128xf32>
    %130 = arith.subf %129, %121 : vector<16x128xf32>
    %131 = arith.mulf %130, %128 : vector<16x128xf32>
    %132 = arith.mulf %121, %101 : vector<16x128xf32>
    %133 = arith.addf %131, %132 : vector<16x128xf32>
    %c2_i32 = arith.constant 2 : i32
    %134 = vector.broadcast %c2_i32 : i32 to vector<16x1xi32>
    %135 = arith.cmpi sgt, %9, %134 : vector<16x1xi32>
    %cst_39 = arith.constant 0.000000e+00 : f32
    %136 = vector.shape_cast %135 : vector<16x1xi1> to vector<16x1xi1>
    %137 = vector.broadcast %136 : vector<16x1xi1> to vector<16x128xi1>
    %138 = vector.broadcast %cst_39 : f32 to vector<16x128xf32>
    %139 = arith.select %137, %133, %138 : vector<16x128xi1>, vector<16x128xf32>
    %140 = arith.addf %98, %139 : vector<16x128xf32>
    %141 = vector.shape_cast %135 : vector<16x1xi1> to vector<16x1xi1>
    %142 = vector.broadcast %141 : vector<16x1xi1> to vector<16x128xi1>
    %143 = arith.select %142, %133, %101 : vector<16x128xi1>, vector<16x128xf32>
    %c3 = arith.constant 3 : index
    %c0_40 = arith.constant 0 : index
    %c0_41 = arith.constant 0 : index
    %144 = vector.load %arg8[%c3, %c0_40, %c0_41] : memref<8x16x384xf32, #tpu.memory_space<vmem>>, vector<1x16x384xf32>
    %145 = vector.shape_cast %144 : vector<1x16x384xf32> to vector<16x384xf32>
    %146 = arith.truncf %143 : vector<16x128xf32> to vector<16x128xbf16>
    %cst_42 = arith.constant dense<0.000000e+00> : vector<16x384xf32>
    %147 = tpu.matmul %146, %14, %cst_42 {dimension_numbers = #tpu.dot_dimension_numbers<[1], [0], [0], [1], [0, 0, 1, 1], [], []>} : vector<16x128xbf16>, vector<128x384xbf16>, vector<16x384xf32> -> vector<16x384xf32>
    %148 = vector.extract_strided_slice %145 {offsets = [0, 0], sizes = [16, 128], strides = [1, 1]} : vector<16x384xf32> to vector<16x128xf32>
    %149 = vector.extract_strided_slice %147 {offsets = [0, 0], sizes = [16, 128], strides = [1, 1]} : vector<16x384xf32> to vector<16x128xf32>
    %150 = arith.addf %148, %149 : vector<16x128xf32>
    %151 = arith.negf %150 : vector<16x128xf32>
    %152 = math.exp %151 : vector<16x128xf32>
    %cst_43 = arith.constant 1.000000e+00 : f32
    %153 = vector.broadcast %cst_43 : f32 to vector<16x128xf32>
    %154 = arith.addf %153, %152 : vector<16x128xf32>
    %155 = arith.divf %153, %154 : vector<16x128xf32>
    %156 = vector.extract_strided_slice %145 {offsets = [0, 128], sizes = [16, 128], strides = [1, 1]} : vector<16x384xf32> to vector<16x128xf32>
    %157 = vector.extract_strided_slice %147 {offsets = [0, 128], sizes = [16, 128], strides = [1, 1]} : vector<16x384xf32> to vector<16x128xf32>
    %158 = arith.addf %156, %157 : vector<16x128xf32>
    %159 = arith.negf %158 : vector<16x128xf32>
    %160 = math.exp %159 : vector<16x128xf32>
    %cst_44 = arith.constant 1.000000e+00 : f32
    %161 = vector.broadcast %cst_44 : f32 to vector<16x128xf32>
    %162 = arith.addf %161, %160 : vector<16x128xf32>
    %163 = arith.divf %161, %162 : vector<16x128xf32>
    %164 = vector.extract_strided_slice %145 {offsets = [0, 256], sizes = [16, 128], strides = [1, 1]} : vector<16x384xf32> to vector<16x128xf32>
    %165 = vector.extract_strided_slice %147 {offsets = [0, 256], sizes = [16, 128], strides = [1, 1]} : vector<16x384xf32> to vector<16x128xf32>
    %166 = vector.broadcast %15 : vector<1x128xf32> to vector<16x128xf32>
    %167 = arith.addf %165, %166 : vector<16x128xf32>
    %168 = arith.mulf %155, %167 : vector<16x128xf32>
    %169 = arith.addf %164, %168 : vector<16x128xf32>
    %170 = math.tanh %169 : vector<16x128xf32>
    %cst_45 = arith.constant 1.000000e+00 : f32
    %171 = vector.broadcast %cst_45 : f32 to vector<16x128xf32>
    %172 = arith.subf %171, %163 : vector<16x128xf32>
    %173 = arith.mulf %172, %170 : vector<16x128xf32>
    %174 = arith.mulf %163, %143 : vector<16x128xf32>
    %175 = arith.addf %173, %174 : vector<16x128xf32>
    %c3_i32 = arith.constant 3 : i32
    %176 = vector.broadcast %c3_i32 : i32 to vector<16x1xi32>
    %177 = arith.cmpi sgt, %9, %176 : vector<16x1xi32>
    %cst_46 = arith.constant 0.000000e+00 : f32
    %178 = vector.shape_cast %177 : vector<16x1xi1> to vector<16x1xi1>
    %179 = vector.broadcast %178 : vector<16x1xi1> to vector<16x128xi1>
    %180 = vector.broadcast %cst_46 : f32 to vector<16x128xf32>
    %181 = arith.select %179, %175, %180 : vector<16x128xi1>, vector<16x128xf32>
    %182 = arith.addf %140, %181 : vector<16x128xf32>
    %183 = vector.shape_cast %177 : vector<16x1xi1> to vector<16x1xi1>
    %184 = vector.broadcast %183 : vector<16x1xi1> to vector<16x128xi1>
    %185 = arith.select %184, %175, %143 : vector<16x128xi1>, vector<16x128xf32>
    %c4 = arith.constant 4 : index
    %c0_47 = arith.constant 0 : index
    %c0_48 = arith.constant 0 : index
    %186 = vector.load %arg8[%c4, %c0_47, %c0_48] : memref<8x16x384xf32, #tpu.memory_space<vmem>>, vector<1x16x384xf32>
    %187 = vector.shape_cast %186 : vector<1x16x384xf32> to vector<16x384xf32>
    %188 = arith.truncf %185 : vector<16x128xf32> to vector<16x128xbf16>
    %cst_49 = arith.constant dense<0.000000e+00> : vector<16x384xf32>
    %189 = tpu.matmul %188, %14, %cst_49 {dimension_numbers = #tpu.dot_dimension_numbers<[1], [0], [0], [1], [0, 0, 1, 1], [], []>} : vector<16x128xbf16>, vector<128x384xbf16>, vector<16x384xf32> -> vector<16x384xf32>
    %190 = vector.extract_strided_slice %187 {offsets = [0, 0], sizes = [16, 128], strides = [1, 1]} : vector<16x384xf32> to vector<16x128xf32>
    %191 = vector.extract_strided_slice %189 {offsets = [0, 0], sizes = [16, 128], strides = [1, 1]} : vector<16x384xf32> to vector<16x128xf32>
    %192 = arith.addf %190, %191 : vector<16x128xf32>
    %193 = arith.negf %192 : vector<16x128xf32>
    %194 = math.exp %193 : vector<16x128xf32>
    %cst_50 = arith.constant 1.000000e+00 : f32
    %195 = vector.broadcast %cst_50 : f32 to vector<16x128xf32>
    %196 = arith.addf %195, %194 : vector<16x128xf32>
    %197 = arith.divf %195, %196 : vector<16x128xf32>
    %198 = vector.extract_strided_slice %187 {offsets = [0, 128], sizes = [16, 128], strides = [1, 1]} : vector<16x384xf32> to vector<16x128xf32>
    %199 = vector.extract_strided_slice %189 {offsets = [0, 128], sizes = [16, 128], strides = [1, 1]} : vector<16x384xf32> to vector<16x128xf32>
    %200 = arith.addf %198, %199 : vector<16x128xf32>
    %201 = arith.negf %200 : vector<16x128xf32>
    %202 = math.exp %201 : vector<16x128xf32>
    %cst_51 = arith.constant 1.000000e+00 : f32
    %203 = vector.broadcast %cst_51 : f32 to vector<16x128xf32>
    %204 = arith.addf %203, %202 : vector<16x128xf32>
    %205 = arith.divf %203, %204 : vector<16x128xf32>
    %206 = vector.extract_strided_slice %187 {offsets = [0, 256], sizes = [16, 128], strides = [1, 1]} : vector<16x384xf32> to vector<16x128xf32>
    %207 = vector.extract_strided_slice %189 {offsets = [0, 256], sizes = [16, 128], strides = [1, 1]} : vector<16x384xf32> to vector<16x128xf32>
    %208 = vector.broadcast %15 : vector<1x128xf32> to vector<16x128xf32>
    %209 = arith.addf %207, %208 : vector<16x128xf32>
    %210 = arith.mulf %197, %209 : vector<16x128xf32>
    %211 = arith.addf %206, %210 : vector<16x128xf32>
    %212 = math.tanh %211 : vector<16x128xf32>
    %cst_52 = arith.constant 1.000000e+00 : f32
    %213 = vector.broadcast %cst_52 : f32 to vector<16x128xf32>
    %214 = arith.subf %213, %205 : vector<16x128xf32>
    %215 = arith.mulf %214, %212 : vector<16x128xf32>
    %216 = arith.mulf %205, %185 : vector<16x128xf32>
    %217 = arith.addf %215, %216 : vector<16x128xf32>
    %c4_i32 = arith.constant 4 : i32
    %218 = vector.broadcast %c4_i32 : i32 to vector<16x1xi32>
    %219 = arith.cmpi sgt, %9, %218 : vector<16x1xi32>
    %cst_53 = arith.constant 0.000000e+00 : f32
    %220 = vector.shape_cast %219 : vector<16x1xi1> to vector<16x1xi1>
    %221 = vector.broadcast %220 : vector<16x1xi1> to vector<16x128xi1>
    %222 = vector.broadcast %cst_53 : f32 to vector<16x128xf32>
    %223 = arith.select %221, %217, %222 : vector<16x128xi1>, vector<16x128xf32>
    %224 = arith.addf %182, %223 : vector<16x128xf32>
    %225 = vector.shape_cast %219 : vector<16x1xi1> to vector<16x1xi1>
    %226 = vector.broadcast %225 : vector<16x1xi1> to vector<16x128xi1>
    %227 = arith.select %226, %217, %185 : vector<16x128xi1>, vector<16x128xf32>
    %c5 = arith.constant 5 : index
    %c0_54 = arith.constant 0 : index
    %c0_55 = arith.constant 0 : index
    %228 = vector.load %arg8[%c5, %c0_54, %c0_55] : memref<8x16x384xf32, #tpu.memory_space<vmem>>, vector<1x16x384xf32>
    %229 = vector.shape_cast %228 : vector<1x16x384xf32> to vector<16x384xf32>
    %230 = arith.truncf %227 : vector<16x128xf32> to vector<16x128xbf16>
    %cst_56 = arith.constant dense<0.000000e+00> : vector<16x384xf32>
    %231 = tpu.matmul %230, %14, %cst_56 {dimension_numbers = #tpu.dot_dimension_numbers<[1], [0], [0], [1], [0, 0, 1, 1], [], []>} : vector<16x128xbf16>, vector<128x384xbf16>, vector<16x384xf32> -> vector<16x384xf32>
    %232 = vector.extract_strided_slice %229 {offsets = [0, 0], sizes = [16, 128], strides = [1, 1]} : vector<16x384xf32> to vector<16x128xf32>
    %233 = vector.extract_strided_slice %231 {offsets = [0, 0], sizes = [16, 128], strides = [1, 1]} : vector<16x384xf32> to vector<16x128xf32>
    %234 = arith.addf %232, %233 : vector<16x128xf32>
    %235 = arith.negf %234 : vector<16x128xf32>
    %236 = math.exp %235 : vector<16x128xf32>
    %cst_57 = arith.constant 1.000000e+00 : f32
    %237 = vector.broadcast %cst_57 : f32 to vector<16x128xf32>
    %238 = arith.addf %237, %236 : vector<16x128xf32>
    %239 = arith.divf %237, %238 : vector<16x128xf32>
    %240 = vector.extract_strided_slice %229 {offsets = [0, 128], sizes = [16, 128], strides = [1, 1]} : vector<16x384xf32> to vector<16x128xf32>
    %241 = vector.extract_strided_slice %231 {offsets = [0, 128], sizes = [16, 128], strides = [1, 1]} : vector<16x384xf32> to vector<16x128xf32>
    %242 = arith.addf %240, %241 : vector<16x128xf32>
    %243 = arith.negf %242 : vector<16x128xf32>
    %244 = math.exp %243 : vector<16x128xf32>
    %cst_58 = arith.constant 1.000000e+00 : f32
    %245 = vector.broadcast %cst_58 : f32 to vector<16x128xf32>
    %246 = arith.addf %245, %244 : vector<16x128xf32>
    %247 = arith.divf %245, %246 : vector<16x128xf32>
    %248 = vector.extract_strided_slice %229 {offsets = [0, 256], sizes = [16, 128], strides = [1, 1]} : vector<16x384xf32> to vector<16x128xf32>
    %249 = vector.extract_strided_slice %231 {offsets = [0, 256], sizes = [16, 128], strides = [1, 1]} : vector<16x384xf32> to vector<16x128xf32>
    %250 = vector.broadcast %15 : vector<1x128xf32> to vector<16x128xf32>
    %251 = arith.addf %249, %250 : vector<16x128xf32>
    %252 = arith.mulf %239, %251 : vector<16x128xf32>
    %253 = arith.addf %248, %252 : vector<16x128xf32>
    %254 = math.tanh %253 : vector<16x128xf32>
    %cst_59 = arith.constant 1.000000e+00 : f32
    %255 = vector.broadcast %cst_59 : f32 to vector<16x128xf32>
    %256 = arith.subf %255, %247 : vector<16x128xf32>
    %257 = arith.mulf %256, %254 : vector<16x128xf32>
    %258 = arith.mulf %247, %227 : vector<16x128xf32>
    %259 = arith.addf %257, %258 : vector<16x128xf32>
    %c5_i32 = arith.constant 5 : i32
    %260 = vector.broadcast %c5_i32 : i32 to vector<16x1xi32>
    %261 = arith.cmpi sgt, %9, %260 : vector<16x1xi32>
    %cst_60 = arith.constant 0.000000e+00 : f32
    %262 = vector.shape_cast %261 : vector<16x1xi1> to vector<16x1xi1>
    %263 = vector.broadcast %262 : vector<16x1xi1> to vector<16x128xi1>
    %264 = vector.broadcast %cst_60 : f32 to vector<16x128xf32>
    %265 = arith.select %263, %259, %264 : vector<16x128xi1>, vector<16x128xf32>
    %266 = arith.addf %224, %265 : vector<16x128xf32>
    %267 = vector.shape_cast %261 : vector<16x1xi1> to vector<16x1xi1>
    %268 = vector.broadcast %267 : vector<16x1xi1> to vector<16x128xi1>
    %269 = arith.select %268, %259, %227 : vector<16x128xi1>, vector<16x128xf32>
    %c6 = arith.constant 6 : index
    %c0_61 = arith.constant 0 : index
    %c0_62 = arith.constant 0 : index
    %270 = vector.load %arg8[%c6, %c0_61, %c0_62] : memref<8x16x384xf32, #tpu.memory_space<vmem>>, vector<1x16x384xf32>
    %271 = vector.shape_cast %270 : vector<1x16x384xf32> to vector<16x384xf32>
    %272 = arith.truncf %269 : vector<16x128xf32> to vector<16x128xbf16>
    %cst_63 = arith.constant dense<0.000000e+00> : vector<16x384xf32>
    %273 = tpu.matmul %272, %14, %cst_63 {dimension_numbers = #tpu.dot_dimension_numbers<[1], [0], [0], [1], [0, 0, 1, 1], [], []>} : vector<16x128xbf16>, vector<128x384xbf16>, vector<16x384xf32> -> vector<16x384xf32>
    %274 = vector.extract_strided_slice %271 {offsets = [0, 0], sizes = [16, 128], strides = [1, 1]} : vector<16x384xf32> to vector<16x128xf32>
    %275 = vector.extract_strided_slice %273 {offsets = [0, 0], sizes = [16, 128], strides = [1, 1]} : vector<16x384xf32> to vector<16x128xf32>
    %276 = arith.addf %274, %275 : vector<16x128xf32>
    %277 = arith.negf %276 : vector<16x128xf32>
    %278 = math.exp %277 : vector<16x128xf32>
    %cst_64 = arith.constant 1.000000e+00 : f32
    %279 = vector.broadcast %cst_64 : f32 to vector<16x128xf32>
    %280 = arith.addf %279, %278 : vector<16x128xf32>
    %281 = arith.divf %279, %280 : vector<16x128xf32>
    %282 = vector.extract_strided_slice %271 {offsets = [0, 128], sizes = [16, 128], strides = [1, 1]} : vector<16x384xf32> to vector<16x128xf32>
    %283 = vector.extract_strided_slice %273 {offsets = [0, 128], sizes = [16, 128], strides = [1, 1]} : vector<16x384xf32> to vector<16x128xf32>
    %284 = arith.addf %282, %283 : vector<16x128xf32>
    %285 = arith.negf %284 : vector<16x128xf32>
    %286 = math.exp %285 : vector<16x128xf32>
    %cst_65 = arith.constant 1.000000e+00 : f32
    %287 = vector.broadcast %cst_65 : f32 to vector<16x128xf32>
    %288 = arith.addf %287, %286 : vector<16x128xf32>
    %289 = arith.divf %287, %288 : vector<16x128xf32>
    %290 = vector.extract_strided_slice %271 {offsets = [0, 256], sizes = [16, 128], strides = [1, 1]} : vector<16x384xf32> to vector<16x128xf32>
    %291 = vector.extract_strided_slice %273 {offsets = [0, 256], sizes = [16, 128], strides = [1, 1]} : vector<16x384xf32> to vector<16x128xf32>
    %292 = vector.broadcast %15 : vector<1x128xf32> to vector<16x128xf32>
    %293 = arith.addf %291, %292 : vector<16x128xf32>
    %294 = arith.mulf %281, %293 : vector<16x128xf32>
    %295 = arith.addf %290, %294 : vector<16x128xf32>
    %296 = math.tanh %295 : vector<16x128xf32>
    %cst_66 = arith.constant 1.000000e+00 : f32
    %297 = vector.broadcast %cst_66 : f32 to vector<16x128xf32>
    %298 = arith.subf %297, %289 : vector<16x128xf32>
    %299 = arith.mulf %298, %296 : vector<16x128xf32>
    %300 = arith.mulf %289, %269 : vector<16x128xf32>
    %301 = arith.addf %299, %300 : vector<16x128xf32>
    %c6_i32 = arith.constant 6 : i32
    %302 = vector.broadcast %c6_i32 : i32 to vector<16x1xi32>
    %303 = arith.cmpi sgt, %9, %302 : vector<16x1xi32>
    %cst_67 = arith.constant 0.000000e+00 : f32
    %304 = vector.shape_cast %303 : vector<16x1xi1> to vector<16x1xi1>
    %305 = vector.broadcast %304 : vector<16x1xi1> to vector<16x128xi1>
    %306 = vector.broadcast %cst_67 : f32 to vector<16x128xf32>
    %307 = arith.select %305, %301, %306 : vector<16x128xi1>, vector<16x128xf32>
    %308 = arith.addf %266, %307 : vector<16x128xf32>
    %309 = vector.shape_cast %303 : vector<16x1xi1> to vector<16x1xi1>
    %310 = vector.broadcast %309 : vector<16x1xi1> to vector<16x128xi1>
    %311 = arith.select %310, %301, %269 : vector<16x128xi1>, vector<16x128xf32>
    %c7 = arith.constant 7 : index
    %c0_68 = arith.constant 0 : index
    %c0_69 = arith.constant 0 : index
    %312 = vector.load %arg8[%c7, %c0_68, %c0_69] : memref<8x16x384xf32, #tpu.memory_space<vmem>>, vector<1x16x384xf32>
    %313 = vector.shape_cast %312 : vector<1x16x384xf32> to vector<16x384xf32>
    %314 = arith.truncf %311 : vector<16x128xf32> to vector<16x128xbf16>
    %cst_70 = arith.constant dense<0.000000e+00> : vector<16x384xf32>
    %315 = tpu.matmul %314, %14, %cst_70 {dimension_numbers = #tpu.dot_dimension_numbers<[1], [0], [0], [1], [0, 0, 1, 1], [], []>} : vector<16x128xbf16>, vector<128x384xbf16>, vector<16x384xf32> -> vector<16x384xf32>
    %316 = vector.extract_strided_slice %313 {offsets = [0, 0], sizes = [16, 128], strides = [1, 1]} : vector<16x384xf32> to vector<16x128xf32>
    %317 = vector.extract_strided_slice %315 {offsets = [0, 0], sizes = [16, 128], strides = [1, 1]} : vector<16x384xf32> to vector<16x128xf32>
    %318 = arith.addf %316, %317 : vector<16x128xf32>
    %319 = arith.negf %318 : vector<16x128xf32>
    %320 = math.exp %319 : vector<16x128xf32>
    %cst_71 = arith.constant 1.000000e+00 : f32
    %321 = vector.broadcast %cst_71 : f32 to vector<16x128xf32>
    %322 = arith.addf %321, %320 : vector<16x128xf32>
    %323 = arith.divf %321, %322 : vector<16x128xf32>
    %324 = vector.extract_strided_slice %313 {offsets = [0, 128], sizes = [16, 128], strides = [1, 1]} : vector<16x384xf32> to vector<16x128xf32>
    %325 = vector.extract_strided_slice %315 {offsets = [0, 128], sizes = [16, 128], strides = [1, 1]} : vector<16x384xf32> to vector<16x128xf32>
    %326 = arith.addf %324, %325 : vector<16x128xf32>
    %327 = arith.negf %326 : vector<16x128xf32>
    %328 = math.exp %327 : vector<16x128xf32>
    %cst_72 = arith.constant 1.000000e+00 : f32
    %329 = vector.broadcast %cst_72 : f32 to vector<16x128xf32>
    %330 = arith.addf %329, %328 : vector<16x128xf32>
    %331 = arith.divf %329, %330 : vector<16x128xf32>
    %332 = vector.extract_strided_slice %313 {offsets = [0, 256], sizes = [16, 128], strides = [1, 1]} : vector<16x384xf32> to vector<16x128xf32>
    %333 = vector.extract_strided_slice %315 {offsets = [0, 256], sizes = [16, 128], strides = [1, 1]} : vector<16x384xf32> to vector<16x128xf32>
    %334 = vector.broadcast %15 : vector<1x128xf32> to vector<16x128xf32>
    %335 = arith.addf %333, %334 : vector<16x128xf32>
    %336 = arith.mulf %323, %335 : vector<16x128xf32>
    %337 = arith.addf %332, %336 : vector<16x128xf32>
    %338 = math.tanh %337 : vector<16x128xf32>
    %cst_73 = arith.constant 1.000000e+00 : f32
    %339 = vector.broadcast %cst_73 : f32 to vector<16x128xf32>
    %340 = arith.subf %339, %331 : vector<16x128xf32>
    %341 = arith.mulf %340, %338 : vector<16x128xf32>
    %342 = arith.mulf %331, %311 : vector<16x128xf32>
    %343 = arith.addf %341, %342 : vector<16x128xf32>
    %c7_i32 = arith.constant 7 : i32
    %344 = vector.broadcast %c7_i32 : i32 to vector<16x1xi32>
    %345 = arith.cmpi sgt, %9, %344 : vector<16x1xi32>
    %cst_74 = arith.constant 0.000000e+00 : f32
    %346 = vector.shape_cast %345 : vector<16x1xi1> to vector<16x1xi1>
    %347 = vector.broadcast %346 : vector<16x1xi1> to vector<16x128xi1>
    %348 = vector.broadcast %cst_74 : f32 to vector<16x128xf32>
    %349 = arith.select %347, %343, %348 : vector<16x128xi1>, vector<16x128xf32>
    %350 = arith.addf %308, %349 : vector<16x128xf32>
    %351 = vector.broadcast %13 : vector<16x1xf32> to vector<16x128xf32>
    %352 = arith.mulf %350, %351 : vector<16x128xf32>
    %c0_75 = arith.constant 0 : index
    %c0_76 = arith.constant 0 : index
    %353 = vector.load %arg7[%c0_75, %c0_76] : memref<16x128xf32, #tpu.memory_space<vmem>>, vector<16x128xf32>
    tpu.vector_store %arg7[%c0_75, %c0_76], %352 {strides = array<i32>} : memref<16x128xf32, #tpu.memory_space<vmem>>, vector<16x128xf32>,
    return
  }
  func.func @transform_0(%arg0: i32) -> (i32, i32, i32) {
    %c0_i32 = arith.constant 0 : i32
    %c0_i32_0 = arith.constant 0 : i32
    %c0_i32_1 = arith.constant 0 : i32
    return %c0_i32, %arg0, %c0_i32_0 : i32, i32, i32
  }
  func.func @transform_1(%arg0: i32) -> (i32, i32) {
    %c0_i32 = arith.constant 0 : i32
    %c0_i32_0 = arith.constant 0 : i32
    return %arg0, %c0_i32 : i32, i32
  }
  func.func @transform_2(%arg0: i32) -> (i32, i32) {
    %c0_i32 = arith.constant 0 : i32
    %c0_i32_0 = arith.constant 0 : i32
    %c0_i32_1 = arith.constant 0 : i32
    return %c0_i32, %c0_i32_0 : i32, i32
  }
  func.func @transform_3(%arg0: i32) -> (i32, i32) {
    %c0_i32 = arith.constant 0 : i32
    %c0_i32_0 = arith.constant 0 : i32
    %c0_i32_1 = arith.constant 0 : i32
    return %c0_i32, %c0_i32_0 : i32, i32
  }
  func.func @transform_4(%arg0: i32) -> (i32, i32) {
    %c0_i32 = arith.constant 0 : i32
    %c0_i32_0 = arith.constant 0 : i32
    %c0_i32_1 = arith.constant 0 : i32
    return %c0_i32, %c0_i32_0 : i32, i32
  }
  func.func @transform_5(%arg0: i32) -> (i32, i32) {
    %c0_i32 = arith.constant 0 : i32
    %c0_i32_0 = arith.constant 0 : i32
    %c0_i32_1 = arith.constant 0 : i32
    return %c0_i32, %c0_i32_0 : i32, i32
  }
  func.func @transform_6(%arg0: i32) -> (i32, i32) {
    %c0_i32 = arith.constant 0 : i32
    %c0_i32_0 = arith.constant 0 : i32
    return %arg0, %c0_i32 : i32, i32
  }
}

</mosaic_0001>

<llo_original>
// kernel: tpu_custom_call.1
$region0: #{tpu_custom_call.1}
  #allocation0 [shape = 'u32[]', space=smem, size = 0x4, offset = 0x4, fixed_abs, tag = 'smem constant byte address 0x4 - core index']
  #allocation1 [shape = 'u32[72,128]{1,0:T(1,128)}', space=vmem, size = 0x9000, scoped, tag = 'internal scratch']
  #allocation2 [shape = 'f32[8,16,384]{2,1,0:T(8,128)}', space=vmem, size = 0x30000, scoped, tag = 'scratch operand']
  %s0 = inlined_call_operand.hbm [shape: bf16[8,16,128], index: 0, kind: input, shape index: {}]
  %s1 = inlined_call_operand.vmem [shape: s32[16,1], index: 1, kind: input, shape index: {}]
  %s2 = inlined_call_operand.hbm [shape: bf16[128,384], index: 2, kind: input, shape index: {}]
  %s3 = inlined_call_operand.hbm [shape: bf16[128,384], index: 3, kind: input, shape index: {}]
  %s4 = inlined_call_operand.vmem [shape: f32[1,384], index: 4, kind: input, shape index: {}]
  %s5 = inlined_call_operand.vmem [shape: f32[1,128], index: 5, kind: input, shape index: {}]
  %s6 = inlined_call_operand.hbm [shape: f32[16,128], index: 6, kind: output, shape index: {}]
  %s7 = sld [smem:[#allocation0]]
  $region46: #{tpu_custom_call.1} parent=0
    _
  %s9 = ssub.s32 1, %s7
  %s10 = scalar_select 0, %s9, %s7
  $region1: #{tpu_custom_call.1} parent=0
    #allocation3 [shape = 'u8[32768]{0}', space=vmem, size = 0x8000, scoped, tag = 'input window, operand 0, single buffered']
    #allocation4 [shape = 's32[1]{0}', space=sflag, size = 0x4, scoped, tag = 'scoped memory for tpu_custom_call.1']
    #allocation5 [shape = 's32[1]{0}', space=sflag, size = 0x4, scoped, tag = 'scoped memory for tpu_custom_call.1']
    #allocation6 [shape = 'u8[98304]{0}', space=vmem, size = 0x18000, scoped, tag = 'input window, operand 2, single buffered']
    #allocation7 [shape = 's32[1]{0}', space=sflag, size = 0x4, scoped, tag = 'scoped memory for tpu_custom_call.1']
    #allocation8 [shape = 'u8[98304]{0}', space=vmem, size = 0x18000, scoped, tag = 'input window, operand 3, single buffered']
    #allocation9 [shape = 'u8[8192]{0}', space=vmem, size = 0x2000, scoped, tag = 'output window, operand 0, single buffered']
    %11 = vsyncpa [#allocation4], 0
    %12 = vsyncpa [#allocation7], 0
    %13 = vsyncpa [#allocation5], 0
    // Predicated region
    $region2: #{tpu_custom_call.1} parent=1 // pred_check
      _
    $region3: #{tpu_custom_call.1} parent=1 // pred_check_branch
      %15 = sbr.rel (0) target = $region5
    $region4: #{tpu_custom_call.1} parent=1 // pred_region
      %17 = vsyncadd [#allocation4], 0
      %s18 = sshll.u32 %s0, 4
      %s19 = int_to_ptr.hbm [resolvable:$true] %s18
      %s20 = sshll.u32 [#allocation3], 4
      %s21 = int_to_ptr.vmem [resolvable:$true] %s20
      %26 = dma.hbm_to_vmem [thread:$0]  %s19, 1024, %s21, [#allocation4], 64, 64, 4
    $region5: #{tpu_custom_call.1} parent=1 // pred_fallthru
      _
    // Predicated region
    $region6: #{tpu_custom_call.1} parent=1 // pred_check
      _
    $region7: #{tpu_custom_call.1} parent=1 // pred_check_branch
      %28 = sbr.rel (0) target = $region9
    $region8: #{tpu_custom_call.1} parent=1 // pred_region
      _
    $region9: #{tpu_custom_call.1} parent=1 // pred_fallthru
      _
    // Predicated region
    $region10: #{tpu_custom_call.1} parent=1 // pred_check
      _
    $region11: #{tpu_custom_call.1} parent=1 // pred_check_branch
      %30 = sbr.rel (0) target = $region13
    $region12: #{tpu_custom_call.1} parent=1 // pred_region
      %32 = vsyncadd [#allocation7], 0
      %s33 = sshll.u32 %s2, 4
      %s34 = int_to_ptr.hbm [resolvable:$true] %s33
      %s35 = sshll.u32 [#allocation6], 4
      %s36 = int_to_ptr.vmem [resolvable:$true] %s35
      %41 = dma.hbm_to_vmem [thread:$0]  %s34, 3072, %s36, [#allocation7], 192, 192, 12
    $region13: #{tpu_custom_call.1} parent=1 // pred_fallthru
      _
    // Predicated region
    $region14: #{tpu_custom_call.1} parent=1 // pred_check
      _
    $region15: #{tpu_custom_call.1} parent=1 // pred_check_branch
      %43 = sbr.rel (0) target = $region17
    $region16: #{tpu_custom_call.1} parent=1 // pred_region
      %45 = vsyncadd [#allocation7], 0
      %s46 = sshll.u32 %s3, 4
      %s47 = int_to_ptr.hbm [resolvable:$true] %s46
      %s48 = sshll.u32 [#allocation8], 4
      %s49 = int_to_ptr.vmem [resolvable:$true] %s48
      %54 = dma.hbm_to_vmem [thread:$0]  %s47, 3072, %s49, [#allocation7], 192, 192, 12
    $region17: #{tpu_custom_call.1} parent=1 // pred_fallthru
      _
    // Predicated region
    $region18: #{tpu_custom_call.1} parent=1 // pred_check
      _
    $region19: #{tpu_custom_call.1} parent=1 // pred_check_branch
      %56 = sbr.rel (0) target = $region21
    $region20: #{tpu_custom_call.1} parent=1 // pred_region
      _
    $region21: #{tpu_custom_call.1} parent=1 // pred_fallthru
      _
    // Predicated region
    $region22: #{tpu_custom_call.1} parent=1 // pred_check
      _
    $region23: #{tpu_custom_call.1} parent=1 // pred_check_branch
      %58 = sbr.rel (0) target = $region25
    $region24: #{tpu_custom_call.1} parent=1 // pred_region
      _
    $region25: #{tpu_custom_call.1} parent=1 // pred_fallthru
      _
    // Predicated region
    $region26: #{tpu_custom_call.1} parent=1 // pred_check
      _
    $region27: #{tpu_custom_call.1} parent=1 // pred_check_branch
      %60 = sbr.rel (0) target = $region29
    $region28: #{tpu_custom_call.1} parent=1 // pred_region
      %62 = dma.done [#allocation4], 1024
    $region29: #{tpu_custom_call.1} parent=1 // pred_fallthru
      _
    // Predicated region
    $region30: #{tpu_custom_call.1} parent=1 // pred_check
      _
    $region31: #{tpu_custom_call.1} parent=1 // pred_check_branch
      %64 = sbr.rel (0) target = $region33
    $region32: #{tpu_custom_call.1} parent=1 // pred_region
      %66 = dma.done [#allocation7], 3072
    $region33: #{tpu_custom_call.1} parent=1 // pred_fallthru
      _
    // Predicated region
    $region34: #{tpu_custom_call.1} parent=1 // pred_check
      _
    $region35: #{tpu_custom_call.1} parent=1 // pred_check_branch
      %68 = sbr.rel (0) target = $region37
    $region36: #{tpu_custom_call.1} parent=1 // pred_region
      %70 = dma.done [#allocation7], 3072
    $region37: #{tpu_custom_call.1} parent=1 // pred_fallthru
      _
    %v72 = vld [vmem:[#allocation3] sm:$0xf]
    %v73 = vld [vmem:[#allocation3 + $0x4] sm:$0xf]
    %v74 = vld [vmem:[#allocation3 + $0x8] sm:$0xf]
    %v75 = vld [vmem:[#allocation3 + $0xc] sm:$0xf]
    %v76 = vld [vmem:[#allocation3 + $0x10] sm:$0xf]
    %v77 = vld [vmem:[#allocation3 + $0x14] sm:$0xf]
    %v78 = vld [vmem:[#allocation3 + $0x18] sm:$0xf]
    %v79 = vld [vmem:[#allocation3 + $0x1c] sm:$0xf]
    %v80 = vld [vmem:[#allocation3 + $0x20] sm:$0xf]
    %v81 = vld [vmem:[#allocation3 + $0x24] sm:$0xf]
    %v82 = vld [vmem:[#allocation3 + $0x28] sm:$0xf]
    %v83 = vld [vmem:[#allocation3 + $0x2c] sm:$0xf]
    %v84 = vld [vmem:[#allocation3 + $0x30] sm:$0xf]
    %v85 = vld [vmem:[#allocation3 + $0x34] sm:$0xf]
    %v86 = vld [vmem:[#allocation3 + $0x38] sm:$0xf]
    %v87 = vld [vmem:[#allocation3 + $0x3c] sm:$0xf]
    %v88 = vld [vmem:[#allocation6] sm:$0xff]
    %v89 = vld [vmem:[#allocation6 + $0x8] sm:$0xf]
    %v90 = vld [vmem:[#allocation6 + $0xc] sm:$0xff]
    %v91 = vld [vmem:[#allocation6 + $0x14] sm:$0xf]
    %v92 = vld [vmem:[#allocation6 + $0x18] sm:$0xff]
    %v93 = vld [vmem:[#allocation6 + $0x20] sm:$0xf]
    %v94 = vld [vmem:[#allocation6 + $0x24] sm:$0xff]
    %v95 = vld [vmem:[#allocation6 + $0x2c] sm:$0xf]
    %v96 = vld [vmem:[#allocation6 + $0x30] sm:$0xff]
    %v97 = vld [vmem:[#allocation6 + $0x38] sm:$0xf]
    %v98 = vld [vmem:[#allocation6 + $0x3c] sm:$0xff]
    %v99 = vld [vmem:[#allocation6 + $0x44] sm:$0xf]
    %v100 = vld [vmem:[#allocation6 + $0x48] sm:$0xff]
    %v101 = vld [vmem:[#allocation6 + $0x50] sm:$0xf]
    %v102 = vld [vmem:[#allocation6 + $0x54] sm:$0xff]
    %v103 = vld [vmem:[#allocation6 + $0x5c] sm:$0xf]
    %v104 = vld [vmem:[#allocation6 + $0x60] sm:$0xff]
    %v105 = vld [vmem:[#allocation6 + $0x68] sm:$0xf]
    %v106 = vld [vmem:[#allocation6 + $0x6c] sm:$0xff]
    %v107 = vld [vmem:[#allocation6 + $0x74] sm:$0xf]
    %v108 = vld [vmem:[#allocation6 + $0x78] sm:$0xff]
    %v109 = vld [vmem:[#allocation6 + $0x80] sm:$0xf]
    %v110 = vld [vmem:[#allocation6 + $0x84] sm:$0xff]
    %v111 = vld [vmem:[#allocation6 + $0x8c] sm:$0xf]
    %v112 = vld [vmem:[#allocation6 + $0x90] sm:$0xff]
    %v113 = vld [vmem:[#allocation6 + $0x98] sm:$0xf]
    %v114 = vld [vmem:[#allocation6 + $0x9c] sm:$0xff]
    %v115 = vld [vmem:[#allocation6 + $0xa4] sm:$0xf]
    %v116 = vld [vmem:[#allocation6 + $0xa8] sm:$0xff]
    %v117 = vld [vmem:[#allocation6 + $0xb0] sm:$0xf]
    %v118 = vld [vmem:[#allocation6 + $0xb4] sm:$0xff]
    %v119 = vld [vmem:[#allocation6 + $0xbc] sm:$0xf]
    %v120 = vld [vmem:[%s4] sm:$0x7]
    %v122 = vperm.slane %v120, 0
    %v123 = vperm.slane %v120, 1
    %v124 = vperm.slane %v120, 2
    %v144 = vunpack.c.l.b16 %v72
    %v145 = vunpack.c.l.b16 %v73
    %v146 = vunpack.c.l.b16 %v74
    %v147 = vunpack.c.l.b16 %v75
    %v148 = vunpack.c.l.b16 %v76
    %v149 = vunpack.c.l.b16 %v77
    %v150 = vunpack.c.l.b16 %v78
    %v151 = vunpack.c.l.b16 %v79
    %v152 = vunpack.c.l.b16 %v80
    %v153 = vunpack.c.l.b16 %v81
    %v154 = vunpack.c.l.b16 %v82
    %v155 = vunpack.c.l.b16 %v83
    %v156 = vunpack.c.l.b16 %v84
    %v157 = vunpack.c.l.b16 %v85
    %v158 = vunpack.c.l.b16 %v86
    %v159 = vunpack.c.l.b16 %v87
    %v160 = vpack.c.b16 %v145, %v144
    %v161 = vpack.c.b16 %v147, %v146
    %v162 = vpack.c.b16 %v149, %v148
    %v163 = vpack.c.b16 %v151, %v150
    %v164 = vpack.c.b16 %v153, %v152
    %v165 = vpack.c.b16 %v155, %v154
    %v166 = vpack.c.b16 %v157, %v156
    %v167 = vpack.c.b16 %v159, %v158
    %v208 = vunpack.c.l.b16 %v88
    %v209 = vunpack.c.h.b16 %v88
    %v210 = vunpack.c.l.b16 %v89
    %v211 = vunpack.c.l.b16 %v90
    %v212 = vunpack.c.h.b16 %v90
    %v213 = vunpack.c.l.b16 %v91
    %v214 = vunpack.c.l.b16 %v92
    %v215 = vunpack.c.h.b16 %v92
    %v216 = vunpack.c.l.b16 %v93
    %v217 = vunpack.c.l.b16 %v94
    %v218 = vunpack.c.h.b16 %v94
    %v219 = vunpack.c.l.b16 %v95
    %v220 = vunpack.c.l.b16 %v96
    %v221 = vunpack.c.h.b16 %v96
    %v222 = vunpack.c.l.b16 %v97
    %v223 = vunpack.c.l.b16 %v98
    %v224 = vunpack.c.h.b16 %v98
    %v225 = vunpack.c.l.b16 %v99
    %v226 = vunpack.c.l.b16 %v100
    %v227 = vunpack.c.h.b16 %v100
    %v228 = vunpack.c.l.b16 %v101
    %v229 = vunpack.c.l.b16 %v102
    %v230 = vunpack.c.h.b16 %v102
    %v231 = vunpack.c.l.b16 %v103
    %v232 = vunpack.c.l.b16 %v104
    %v233 = vunpack.c.h.b16 %v104
    %v234 = vunpack.c.l.b16 %v105
    %v235 = vunpack.c.l.b16 %v106
    %v236 = vunpack.c.h.b16 %v106
    %v237 = vunpack.c.l.b16 %v107
    %v238 = vunpack.c.l.b16 %v108
    %v239 = vunpack.c.h.b16 %v108
    %v240 = vunpack.c.l.b16 %v109
    %v241 = vunpack.c.l.b16 %v110
    %v242 = vunpack.c.h.b16 %v110
    %v243 = vunpack.c.l.b16 %v111
    %v244 = vunpack.c.l.b16 %v112
    %v245 = vunpack.c.h.b16 %v112
    %v246 = vunpack.c.l.b16 %v113
    %v247 = vunpack.c.l.b16 %v114
    %v248 = vunpack.c.h.b16 %v114
    %v249 = vunpack.c.l.b16 %v115
    %v250 = vunpack.c.l.b16 %v116
    %v251 = vunpack.c.h.b16 %v116
    %v252 = vunpack.c.l.b16 %v117
    %v253 = vunpack.c.l.b16 %v118
    %v254 = vunpack.c.h.b16 %v118
    %v255 = vunpack.c.l.b16 %v119
    %v256 = vpack.c.b16 %v211, %v208
    %v257 = vpack.c.b16 %v212, %v209
    %v258 = vpack.c.b16 %v213, %v210
    %v259 = vpack.c.b16 %v217, %v214
    %v260 = vpack.c.b16 %v218, %v215
    %v261 = vpack.c.b16 %v219, %v216
    %v262 = vpack.c.b16 %v223, %v220
    %v263 = vpack.c.b16 %v224, %v221
    %v264 = vpack.c.b16 %v225, %v222
    %v265 = vpack.c.b16 %v229, %v226
    %v266 = vpack.c.b16 %v230, %v227
    %v267 = vpack.c.b16 %v231, %v228
    %v268 = vpack.c.b16 %v235, %v232
    %v269 = vpack.c.b16 %v236, %v233
    %v270 = vpack.c.b16 %v237, %v234
    %v271 = vpack.c.b16 %v241, %v238
    %v272 = vpack.c.b16 %v242, %v239
    %v273 = vpack.c.b16 %v243, %v240
    %v274 = vpack.c.b16 %v247, %v244
    %v275 = vpack.c.b16 %v248, %v245
    %v276 = vpack.c.b16 %v249, %v246
    %v277 = vpack.c.b16 %v253, %v250
    %v278 = vpack.c.b16 %v254, %v251
    %v279 = vpack.c.b16 %v255, %v252
    %304 = vmatpush.bf16.msra.mxu0 %v277
    %305 = vmatpush.bf16.msra.mxu0 %v274
    %306 = vmatpush.bf16.msra.mxu0 %v271
    %307 = vmatpush.bf16.msra.mxu0 %v268
    %308 = vmatpush.bf16.msra.mxu0 %v265
    %309 = vmatpush.bf16.msra.mxu0 %v262
    %310 = vmatpush.bf16.msra.mxu0 %v259
    %311 = vmatpush.bf16.msra.mxu0 %v256
    %312 = vmatmul.bf16.gmra.mxu0 %v160
    %v313 = vpop.f32.mrf.mxu0
    %v314 = vadd.f32 %v122, %v313
    %v315 = vpop.f32.mrf.mxu0
    %v316 = vadd.f32 %v122, %v315
    %317 = vmatmul.bf16.gmra.mxu0 %v161
    %v318 = vpop.f32.mrf.mxu0
    %v319 = vadd.f32 %v122, %v318
    %v320 = vpop.f32.mrf.mxu0
    %v321 = vadd.f32 %v122, %v320
    %322 = vmatmul.bf16.gmra.mxu0 %v162
    %v323 = vpop.f32.mrf.mxu0
    %v324 = vadd.f32 %v122, %v323
    %v325 = vpop.f32.mrf.mxu0
    %v326 = vadd.f32 %v122, %v325
    %327 = vmatmul.bf16.gmra.mxu0 %v163
    %v328 = vpop.f32.mrf.mxu0
    %v329 = vadd.f32 %v122, %v328
    %v330 = vpop.f32.mrf.mxu0
    %v331 = vadd.f32 %v122, %v330
    %332 = vmatmul.bf16.gmra.mxu0 %v164
    %v333 = vpop.f32.mrf.mxu0
    %v334 = vadd.f32 %v122, %v333
    %v335 = vpop.f32.mrf.mxu0
    %v336 = vadd.f32 %v122, %v335
    %337 = vmatmul.bf16.gmra.mxu0 %v165
    %v338 = vpop.f32.mrf.mxu0
    %v339 = vadd.f32 %v122, %v338
    %v340 = vpop.f32.mrf.mxu0
    %v341 = vadd.f32 %v122, %v340
    %342 = vmatmul.bf16.gmra.mxu0 %v166
    %v343 = vpop.f32.mrf.mxu0
    %v344 = vadd.f32 %v122, %v343
    %v345 = vpop.f32.mrf.mxu0
    %v346 = vadd.f32 %v122, %v345
    %347 = vmatmul.bf16.gmra.mxu0 %v167
    %v348 = vpop.f32.mrf.mxu0
    %v349 = vadd.f32 %v122, %v348
    %v350 = vpop.f32.mrf.mxu0
    %v351 = vadd.f32 %v122, %v350
    %352 = vdwg.mxu0
    %353 = vmatpush.bf16.msra.mxu0 %v278
    %354 = vmatpush.bf16.msra.mxu0 %v275
    %355 = vmatpush.bf16.msra.mxu0 %v272
    %356 = vmatpush.bf16.msra.mxu0 %v269
    %357 = vmatpush.bf16.msra.mxu0 %v266
    %358 = vmatpush.bf16.msra.mxu0 %v263
    %359 = vmatpush.bf16.msra.mxu0 %v260
    %360 = vmatpush.bf16.msra.mxu0 %v257
    %361 = vmatmul.bf16.gmra.mxu0 %v160
    %v362 = vpop.f32.mrf.mxu0
    %v363 = vadd.f32 %v123, %v362
    %v364 = vpop.f32.mrf.mxu0
    %v365 = vadd.f32 %v123, %v364
    %366 = vmatmul.bf16.gmra.mxu0 %v161
    %v367 = vpop.f32.mrf.mxu0
    %v368 = vadd.f32 %v123, %v367
    %v369 = vpop.f32.mrf.mxu0
    %v370 = vadd.f32 %v123, %v369
    %371 = vmatmul.bf16.gmra.mxu0 %v162
    %v372 = vpop.f32.mrf.mxu0
    %v373 = vadd.f32 %v123, %v372
    %v374 = vpop.f32.mrf.mxu0
    %v375 = vadd.f32 %v123, %v374
    %376 = vmatmul.bf16.gmra.mxu0 %v163
    %v377 = vpop.f32.mrf.mxu0
    %v378 = vadd.f32 %v123, %v377
    %v379 = vpop.f32.mrf.mxu0
    %v380 = vadd.f32 %v123, %v379
    %381 = vmatmul.bf16.gmra.mxu0 %v164
    %v382 = vpop.f32.mrf.mxu0
    %v383 = vadd.f32 %v123, %v382
    %v384 = vpop.f32.mrf.mxu0
    %v385 = vadd.f32 %v123, %v384
    %386 = vmatmul.bf16.gmra.mxu0 %v165
    %v387 = vpop.f32.mrf.mxu0
    %v388 = vadd.f32 %v123, %v387
    %v389 = vpop.f32.mrf.mxu0
    %v390 = vadd.f32 %v123, %v389
    %391 = vmatmul.bf16.gmra.mxu0 %v166
    %v392 = vpop.f32.mrf.mxu0
    %v393 = vadd.f32 %v123, %v392
    %v394 = vpop.f32.mrf.mxu0
    %v395 = vadd.f32 %v123, %v394
    %396 = vmatmul.bf16.gmra.mxu0 %v167
    %v397 = vpop.f32.mrf.mxu0
    %v398 = vadd.f32 %v123, %v397
    %v399 = vpop.f32.mrf.mxu0
    %v400 = vadd.f32 %v123, %v399
    %401 = vdwg.mxu0
    %402 = vmatpush.bf16.msra.mxu0 %v279
    %403 = vmatpush.bf16.msra.mxu0 %v276
    %404 = vmatpush.bf16.msra.mxu0 %v273
    %405 = vmatpush.bf16.msra.mxu0 %v270
    %406 = vmatpush.bf16.msra.mxu0 %v267
    %407 = vmatpush.bf16.msra.mxu0 %v264
    %408 = vmatpush.bf16.msra.mxu0 %v261
    %409 = vmatpush.bf16.msra.mxu0 %v258
    %410 = vmatmul.bf16.gmra.mxu0 %v160
    %v411 = vpop.f32.mrf.mxu0
    %v412 = vadd.f32 %v124, %v411
    %v413 = vpop.f32.mrf.mxu0
    %v414 = vadd.f32 %v124, %v413
    %415 = vmatmul.bf16.gmra.mxu0 %v161
    %v416 = vpop.f32.mrf.mxu0
    %v417 = vadd.f32 %v124, %v416
    %v418 = vpop.f32.mrf.mxu0
    %v419 = vadd.f32 %v124, %v418
    %420 = vmatmul.bf16.gmra.mxu0 %v162
    %v421 = vpop.f32.mrf.mxu0
    %v422 = vadd.f32 %v124, %v421
    %v423 = vpop.f32.mrf.mxu0
    %v424 = vadd.f32 %v124, %v423
    %425 = vmatmul.bf16.gmra.mxu0 %v163
    %v426 = vpop.f32.mrf.mxu0
    %v427 = vadd.f32 %v124, %v426
    %v428 = vpop.f32.mrf.mxu0
    %v429 = vadd.f32 %v124, %v428
    %430 = vmatmul.bf16.gmra.mxu0 %v164
    %v431 = vpop.f32.mrf.mxu0
    %v432 = vadd.f32 %v124, %v431
    %v433 = vpop.f32.mrf.mxu0
    %v434 = vadd.f32 %v124, %v433
    %435 = vmatmul.bf16.gmra.mxu0 %v165
    %v436 = vpop.f32.mrf.mxu0
    %v437 = vadd.f32 %v124, %v436
    %v438 = vpop.f32.mrf.mxu0
    %v439 = vadd.f32 %v124, %v438
    %440 = vmatmul.bf16.gmra.mxu0 %v166
    %v441 = vpop.f32.mrf.mxu0
    %v442 = vadd.f32 %v124, %v441
    %v443 = vpop.f32.mrf.mxu0
    %v444 = vadd.f32 %v124, %v443
    %445 = vmatmul.bf16.gmra.mxu0 %v167
    %v446 = vpop.f32.mrf.mxu0
    %v447 = vadd.f32 %v124, %v446
    %v448 = vpop.f32.mrf.mxu0
    %v449 = vadd.f32 %v124, %v448
    %450 = vdwg.mxu0
    %451 = vst [vmem:[#allocation2] sm:$0xff] %v314
    %452 = vst [vmem:[#allocation2 + $0x8] sm:$0xff] %v363
    %453 = vst [vmem:[#allocation2 + $0x10] sm:$0xff] %v412
    %454 = vst [vmem:[#allocation2 + $0x18] sm:$0xff] %v316
    %455 = vst [vmem:[#allocation2 + $0x20] sm:$0xff] %v365
    %456 = vst [vmem:[#allocation2 + $0x28] sm:$0xff] %v414
    %457 = vst [vmem:[#allocation2 + $0x30] sm:$0xff] %v319
    %458 = vst [vmem:[#allocation2 + $0x38] sm:$0xff] %v368
    %459 = vst [vmem:[#allocation2 + $0x40] sm:$0xff] %v417
    %460 = vst [vmem:[#allocation2 + $0x48] sm:$0xff] %v321
    %461 = vst [vmem:[#allocation2 + $0x50] sm:$0xff] %v370
    %462 = vst [vmem:[#allocation2 + $0x58] sm:$0xff] %v419
    %463 = vst [vmem:[#allocation2 + $0x60] sm:$0xff] %v324
    %464 = vst [vmem:[#allocation2 + $0x68] sm:$0xff] %v373
    %465 = vst [vmem:[#allocation2 + $0x70] sm:$0xff] %v422
    %466 = vst [vmem:[#allocation2 + $0x78] sm:$0xff] %v326
    %467 = vst [vmem:[#allocation2 + $0x80] sm:$0xff] %v375
    %468 = vst [vmem:[#allocation2 + $0x88] sm:$0xff] %v424
    %469 = vst [vmem:[#allocation2 + $0x90] sm:$0xff] %v329
    %470 = vst [vmem:[#allocation2 + $0x98] sm:$0xff] %v378
    %471 = vst [vmem:[#allocation2 + $0xa0] sm:$0xff] %v427
    %472 = vst [vmem:[#allocation2 + $0xa8] sm:$0xff] %v331
    %473 = vst [vmem:[#allocation2 + $0xb0] sm:$0xff] %v380
    %474 = vst [vmem:[#allocation2 + $0xb8] sm:$0xff] %v429
    %475 = vst [vmem:[#allocation2 + $0xc0] sm:$0xff] %v334
    %476 = vst [vmem:[#allocation2 + $0xc8] sm:$0xff] %v383
    %477 = vst [vmem:[#allocation2 + $0xd0] sm:$0xff] %v432
    %478 = vst [vmem:[#allocation2 + $0xd8] sm:$0xff] %v336
    %479 = vst [vmem:[#allocation2 + $0xe0] sm:$0xff] %v385
    %480 = vst [vmem:[#allocation2 + $0xe8] sm:$0xff] %v434
    %481 = vst [vmem:[#allocation2 + $0xf0] sm:$0xff] %v339
    %482 = vst [vmem:[#allocation2 + $0xf8] sm:$0xff] %v388
    %483 = vst [vmem:[#allocation2 + $0x100] sm:$0xff] %v437
    %484 = vst [vmem:[#allocation2 + $0x108] sm:$0xff] %v341
    %485 = vst [vmem:[#allocation2 + $0x110] sm:$0xff] %v390
    %486 = vst [vmem:[#allocation2 + $0x118] sm:$0xff] %v439
    %487 = vst [vmem:[#allocation2 + $0x120] sm:$0xff] %v344
    %488 = vst [vmem:[#allocation2 + $0x128] sm:$0xff] %v393
    %489 = vst [vmem:[#allocation2 + $0x130] sm:$0xff] %v442
    %490 = vst [vmem:[#allocation2 + $0x138] sm:$0xff] %v346
    %491 = vst [vmem:[#allocation2 + $0x140] sm:$0xff] %v395
    %492 = vst [vmem:[#allocation2 + $0x148] sm:$0xff] %v444
    %493 = vst [vmem:[#allocation2 + $0x150] sm:$0xff] %v349
    %494 = vst [vmem:[#allocation2 + $0x158] sm:$0xff] %v398
    %495 = vst [vmem:[#allocation2 + $0x160] sm:$0xff] %v447
    %496 = vst [vmem:[#allocation2 + $0x168] sm:$0xff] %v351
    %497 = vst [vmem:[#allocation2 + $0x170] sm:$0xff] %v400
    %498 = vst [vmem:[#allocation2 + $0x178] sm:$0xff] %v449
    %v499 = vld [vmem:[%s1] sm:$0xff]
    %v500 = vld [vmem:[%s1 + $0x8] sm:$0xff]
    %v501 = vcvt.s32.f32 %v499
    %v502 = vcvt.s32.f32 %v500
    %v503 = vmax.f32 %v501, 1.0
    %v504 = vmax.f32 %v502, 1.0
    %v505 = vrcp.pop %v503
    %v506 = vrcp.pop %v504
    %v507 = vld [vmem:[#allocation8] sm:$0xff]
    %v508 = vld [vmem:[#allocation8 + $0x8] sm:$0xf]
    %v509 = vld [vmem:[#allocation8 + $0xc] sm:$0xff]
    %v510 = vld [vmem:[#allocation8 + $0x14] sm:$0xf]
    %v511 = vld [vmem:[#allocation8 + $0x18] sm:$0xff]
    %v512 = vld [vmem:[#allocation8 + $0x20] sm:$0xf]
    %v513 = vld [vmem:[#allocation8 + $0x24] sm:$0xff]
    %v514 = vld [vmem:[#allocation8 + $0x2c] sm:$0xf]
    %v515 = vld [vmem:[#allocation8 + $0x30] sm:$0xff]
    %v516 = vld [vmem:[#allocation8 + $0x38] sm:$0xf]
    %v517 = vld [vmem:[#allocation8 + $0x3c] sm:$0xff]
    %v518 = vld [vmem:[#allocation8 + $0x44] sm:$0xf]
    %v519 = vld [vmem:[#allocation8 + $0x48] sm:$0xff]
    %v520 = vld [vmem:[#allocation8 + $0x50] sm:$0xf]
    %v521 = vld [vmem:[#allocation8 + $0x54] sm:$0xff]
    %v522 = vld [vmem:[#allocation8 + $0x5c] sm:$0xf]
    %v523 = vld [vmem:[#allocation8 + $0x60] sm:$0xff]
    %v524 = vld [vmem:[#allocation8 + $0x68] sm:$0xf]
    %v525 = vld [vmem:[#allocation8 + $0x6c] sm:$0xff]
    %v526 = vld [vmem:[#allocation8 + $0x74] sm:$0xf]
    %v527 = vld [vmem:[#allocation8 + $0x78] sm:$0xff]
    %v528 = vld [vmem:[#allocation8 + $0x80] sm:$0xf]
    %v529 = vld [vmem:[#allocation8 + $0x84] sm:$0xff]
    %v530 = vld [vmem:[#allocation8 + $0x8c] sm:$0xf]
    %v531 = vld [vmem:[#allocation8 + $0x90] sm:$0xff]
    %v532 = vld [vmem:[#allocation8 + $0x98] sm:$0xf]
    %v533 = vld [vmem:[#allocation8 + $0x9c] sm:$0xff]
    %v534 = vld [vmem:[#allocation8 + $0xa4] sm:$0xf]
    %v535 = vld [vmem:[#allocation8 + $0xa8] sm:$0xff]
    %v536 = vld [vmem:[#allocation8 + $0xb0] sm:$0xf]
    %v537 = vld [vmem:[#allocation8 + $0xb4] sm:$0xff]
    %v538 = vld [vmem:[#allocation8 + $0xbc] sm:$0xf]
    %v539 = vld [vmem:[%s5] sm:$0x1]
    %v540 = vld [vmem:[#allocation2] sm:$0xff]
    %v541 = vld [vmem:[#allocation2 + $0x8] sm:$0xff]
    %v542 = vld [vmem:[#allocation2 + $0x10] sm:$0xff]
    %v543 = vld [vmem:[#allocation2 + $0x18] sm:$0xff]
    %v544 = vld [vmem:[#allocation2 + $0x20] sm:$0xff]
    %v545 = vld [vmem:[#allocation2 + $0x28] sm:$0xff]
    %v578 = vunpack.c.l.b16 %v507
    %v579 = vunpack.c.h.b16 %v507
    %v580 = vunpack.c.l.b16 %v508
    %v581 = vunpack.c.l.b16 %v509
    %v582 = vunpack.c.h.b16 %v509
    %v583 = vunpack.c.l.b16 %v510
    %v584 = vunpack.c.l.b16 %v511
    %v585 = vunpack.c.h.b16 %v511
    %v586 = vunpack.c.l.b16 %v512
    %v587 = vunpack.c.l.b16 %v513
    %v588 = vunpack.c.h.b16 %v513
    %v589 = vunpack.c.l.b16 %v514
    %v590 = vunpack.c.l.b16 %v515
    %v591 = vunpack.c.h.b16 %v515
    %v592 = vunpack.c.l.b16 %v516
    %v593 = vunpack.c.l.b16 %v517
    %v594 = vunpack.c.h.b16 %v517
    %v595 = vunpack.c.l.b16 %v518
    %v596 = vunpack.c.l.b16 %v519
    %v597 = vunpack.c.h.b16 %v519
    %v598 = vunpack.c.l.b16 %v520
    %v599 = vunpack.c.l.b16 %v521
    %v600 = vunpack.c.h.b16 %v521
    %v601 = vunpack.c.l.b16 %v522
    %v602 = vunpack.c.l.b16 %v523
    %v603 = vunpack.c.h.b16 %v523
    %v604 = vunpack.c.l.b16 %v524
    %v605 = vunpack.c.l.b16 %v525
    %v606 = vunpack.c.h.b16 %v525
    %v607 = vunpack.c.l.b16 %v526
    %v608 = vunpack.c.l.b16 %v527
    %v609 = vunpack.c.h.b16 %v527
    %v610 = vunpack.c.l.b16 %v528
    %v611 = vunpack.c.l.b16 %v529
    %v612 = vunpack.c.h.b16 %v529
    %v613 = vunpack.c.l.b16 %v530
    %v614 = vunpack.c.l.b16 %v531
    %v615 = vunpack.c.h.b16 %v531
    %v616 = vunpack.c.l.b16 %v532
    %v617 = vunpack.c.l.b16 %v533
    %v618 = vunpack.c.h.b16 %v533
    %v619 = vunpack.c.l.b16 %v534
    %v620 = vunpack.c.l.b16 %v535
    %v621 = vunpack.c.h.b16 %v535
    %v622 = vunpack.c.l.b16 %v536
    %v623 = vunpack.c.l.b16 %v537
    %v624 = vunpack.c.h.b16 %v537
    %v625 = vunpack.c.l.b16 %v538
    %v626 = vpack.c.b16 %v581, %v578
    %v627 = vpack.c.b16 %v582, %v579
    %v628 = vpack.c.b16 %v583, %v580
    %v629 = vpack.c.b16 %v587, %v584
    %v630 = vpack.c.b16 %v588, %v585
    %v631 = vpack.c.b16 %v589, %v586
    %v632 = vpack.c.b16 %v593, %v590
    %v633 = vpack.c.b16 %v594, %v591
    %v634 = vpack.c.b16 %v595, %v592
    %v635 = vpack.c.b16 %v599, %v596
    %v636 = vpack.c.b16 %v600, %v597
    %v637 = vpack.c.b16 %v601, %v598
    %v638 = vpack.c.b16 %v605, %v602
    %v639 = vpack.c.b16 %v606, %v603
    %v640 = vpack.c.b16 %v607, %v604
    %v641 = vpack.c.b16 %v611, %v608
    %v642 = vpack.c.b16 %v612, %v609
    %v643 = vpack.c.b16 %v613, %v610
    %v644 = vpack.c.b16 %v617, %v614
    %v645 = vpack.c.b16 %v618, %v615
    %v646 = vpack.c.b16 %v619, %v616
    %v647 = vpack.c.b16 %v623, %v620
    %v648 = vpack.c.b16 %v624, %v621
    %v649 = vpack.c.b16 %v625, %v622
    %674 = vmatpush.bf16.msra.mxu0 %v647
    %675 = vmatpush.bf16.msra.mxu0 %v644
    %676 = vmatpush.bf16.msra.mxu0 %v641
    %677 = vmatpush.bf16.msra.mxu0 %v638
    %678 = vmatpush.bf16.msra.mxu0 %v635
    %679 = vmatpush.bf16.msra.mxu0 %v632
    %680 = vmatpush.bf16.msra.mxu0 %v629
    %681 = vmatpush.bf16.msra.mxu0 %v626
    %682 = vmatmul.bf16.gmra.mxu0 0
    %v683 = vpop.f32.mrf.mxu0
    %v684 = vadd.f32 0.0, %v683
    %v685 = vpop.f32.mrf.mxu0
    %v686 = vadd.f32 0.0, %v685
    %687 = vdwg.mxu0
    %688 = vmatpush.bf16.msra.mxu0 %v648
    %689 = vmatpush.bf16.msra.mxu0 %v645
    %690 = vmatpush.bf16.msra.mxu0 %v642
    %691 = vmatpush.bf16.msra.mxu0 %v639
    %692 = vmatpush.bf16.msra.mxu0 %v636
    %693 = vmatpush.bf16.msra.mxu0 %v633
    %694 = vmatpush.bf16.msra.mxu0 %v630
    %695 = vmatpush.bf16.msra.mxu0 %v627
    %696 = vmatmul.bf16.gmra.mxu0 0
    %v697 = vpop.f32.mrf.mxu0
    %v698 = vadd.f32 0.0, %v697
    %v699 = vpop.f32.mrf.mxu0
    %v700 = vadd.f32 0.0, %v699
    %701 = vdwg.mxu0
    %702 = vmatpush.bf16.msra.mxu0 %v649
    %703 = vmatpush.bf16.msra.mxu0 %v646
    %704 = vmatpush.bf16.msra.mxu0 %v643
    %705 = vmatpush.bf16.msra.mxu0 %v640
    %706 = vmatpush.bf16.msra.mxu0 %v637
    %707 = vmatpush.bf16.msra.mxu0 %v634
    %708 = vmatpush.bf16.msra.mxu0 %v631
    %709 = vmatpush.bf16.msra.mxu0 %v628
    %710 = vmatmul.bf16.gmra.mxu0 0
    %v711 = vpop.f32.mrf.mxu0
    %v712 = vadd.f32 0.0, %v711
    %v713 = vpop.f32.mrf.mxu0
    %v714 = vadd.f32 0.0, %v713
    %715 = vdwg.mxu0
    %v716 = vadd.f32 %v540, %v684
    %v717 = vadd.f32 %v543, %v686
    %v718 = vxor.u32 %v716, 2147483648
    %v719 = vxor.u32 %v717, 2147483648
    %v720 = vmul.f32 %v718, 1.442695
    %v721 = vpow.pop %v720
    %v722 = vmul.f32 %v719, 1.442695
    %v723 = vpow.pop %v722
    %v724 = vadd.f32 %v721, 1.0
    %v725 = vadd.f32 %v723, 1.0
    %v726 = vrcp.pop %v724
    %v727 = vmul.f32 %v724, %v726
    %v728 = vsub.f32 1.0, %v727
    %v729 = vmul.f32 %v726, %v728
    %v730 = vadd.f32 %v726, %v729
    %vm731 = vweird.f32 %v724
    %vm732 = vweird.f32 %v726
    %vm733 = vmor %vm731, %vm732
    %v734 = vsel %vm733, %v726, %v730
    %v735 = vand.u32 2147483647, %v724
    %vm736 = vcmp.eq.f32.partialorder %v735, 8.507059e+37
    %v737 = vand.u32 %v724, 2147483648
    %v738 = vor.u32 1.1754944e-38, %v737
    %v739 = vsel %vm736, %v738, %v734
    %v740 = vmul.f32 1.0, %v739
    %v741 = vrcp.pop %v725
    %v742 = vmul.f32 %v725, %v741
    %v743 = vsub.f32 1.0, %v742
    %v744 = vmul.f32 %v741, %v743
    %v745 = vadd.f32 %v741, %v744
    %vm746 = vweird.f32 %v725
    %vm747 = vweird.f32 %v741
    %vm748 = vmor %vm746, %vm747
    %v749 = vsel %vm748, %v741, %v745
    %v750 = vand.u32 2147483647, %v725
    %vm751 = vcmp.eq.f32.partialorder %v750, 8.507059e+37
    %v752 = vand.u32 %v725, 2147483648
    %v753 = vor.u32 1.1754944e-38, %v752
    %v754 = vsel %vm751, %v753, %v749
    %v755 = vmul.f32 1.0, %v754
    %v756 = vadd.f32 %v541, %v698
    %v757 = vadd.f32 %v544, %v700
    %v758 = vxor.u32 %v756, 2147483648
    %v759 = vxor.u32 %v757, 2147483648
    %v760 = vmul.f32 %v758, 1.442695
    %v761 = vpow.pop %v760
    %v762 = vmul.f32 %v759, 1.442695
    %v763 = vpow.pop %v762
    %v764 = vadd.f32 %v761, 1.0
    %v765 = vadd.f32 %v763, 1.0
    %v766 = vrcp.pop %v764
    %v767 = vmul.f32 %v764, %v766
    %v768 = vsub.f32 1.0, %v767
    %v769 = vmul.f32 %v766, %v768
    %v770 = vadd.f32 %v766, %v769
    %vm771 = vweird.f32 %v764
    %vm772 = vweird.f32 %v766
    %vm773 = vmor %vm771, %vm772
    %v774 = vsel %vm773, %v766, %v770
    %v775 = vand.u32 2147483647, %v764
    %vm776 = vcmp.eq.f32.partialorder %v775, 8.507059e+37
    %v777 = vand.u32 %v764, 2147483648
    %v778 = vor.u32 1.1754944e-38, %v777
    %v779 = vsel %vm776, %v778, %v774
    %v780 = vmul.f32 1.0, %v779
    %v781 = vrcp.pop %v765
    %v782 = vmul.f32 %v765, %v781
    %v783 = vsub.f32 1.0, %v782
    %v784 = vmul.f32 %v781, %v783
    %v785 = vadd.f32 %v781, %v784
    %vm786 = vweird.f32 %v765
    %vm787 = vweird.f32 %v781
    %vm788 = vmor %vm786, %vm787
    %v789 = vsel %vm788, %v781, %v785
    %v790 = vand.u32 2147483647, %v765
    %vm791 = vcmp.eq.f32.partialorder %v790, 8.507059e+37
    %v792 = vand.u32 %v765, 2147483648
    %v793 = vor.u32 1.1754944e-38, %v792
    %v794 = vsel %vm791, %v793, %v789
    %v795 = vmul.f32 1.0, %v794
    %v797 = vperm.slane %v539, 0
    %v799 = vadd.f32 %v712, %v797
    %v800 = vadd.f32 %v714, %v797
    %v801 = vmul.f32 %v740, %v799
    %v802 = vmul.f32 %v755, %v800
    %v803 = vadd.f32 %v542, %v801
    %v804 = vadd.f32 %v545, %v802
    %v805 = vtanh.pop %v803
    %v806 = vtanh.pop %v804
    %v807 = vsub.f32 1.0, %v780
    %v808 = vsub.f32 1.0, %v795
    %v809 = vmul.f32 %v807, %v805
    %v810 = vmul.f32 %v808, %v806
    %v811 = vmul.f32 %v780, 0.0
    %v812 = vmul.f32 %v795, 0.0
    %v813 = vadd.f32 %v809, %v811
    %v814 = vadd.f32 %v810, %v812
    %vm815 = vcmp.gt.s32.totalorder %v499, 0
    %vm816 = vcmp.gt.s32.totalorder %v500, 0
    %v817 = vsel %vm815, 1, 0
    %v818 = vsel %vm816, 1, 0
    %819 = vset.pattern.permute.xlu0 0
    %820 = vperm.xlu0 %819, %v817
    %v821 = vpop.permute.xlu0 %820
    %822 = vset.pattern.permute.xlu0 0
    %823 = vperm.xlu0 %822, %v818
    %v824 = vpop.permute.xlu0 %823
    %vm825 = vcmp.eq.s32.totalorder %v821, 1
    %vm826 = vcmp.eq.s32.totalorder %v824, 1
    %v827 = vsel %vm825, %v813, 0.0
    %v828 = vsel %vm826, %v814, 0.0
    %v829 = vadd.f32 %v827, 0.0
    %v830 = vadd.f32 %v828, 0.0
    %s831 = scalar_lea.vmem [#allocation2], 48
    %v832 = vld [vmem:[%s831] sm:$0xff]
    %v833 = vld [vmem:[%s831 + $0x8] sm:$0xff]
    %v834 = vld [vmem:[%s831 + $0x10] sm:$0xff]
    %v835 = vld [vmem:[%s831 + $0x18] sm:$0xff]
    %v836 = vld [vmem:[%s831 + $0x20] sm:$0xff]
    %v837 = vld [vmem:[%s831 + $0x28] sm:$0xff]
    %v838 = vpack.c.bf16 %v828, %v827
    %839 = vmatpush.bf16.msra.mxu0 %v647
    %840 = vmatpush.bf16.msra.mxu0 %v644
    %841 = vmatpush.bf16.msra.mxu0 %v641
    %842 = vmatpush.bf16.msra.mxu0 %v638
    %843 = vmatpush.bf16.msra.mxu0 %v635
    %844 = vmatpush.bf16.msra.mxu0 %v632
    %845 = vmatpush.bf16.msra.mxu0 %v629
    %846 = vmatpush.bf16.msra.mxu0 %v626
    %847 = vmatmul.bf16.gmra.mxu0 %v838
    %v848 = vpop.f32.mrf.mxu0
    %v849 = vadd.f32 0.0, %v848
    %v850 = vpop.f32.mrf.mxu0
    %v851 = vadd.f32 0.0, %v850
    %852 = vdwg.mxu0
    %853 = vmatpush.bf16.msra.mxu0 %v648
    %854 = vmatpush.bf16.msra.mxu0 %v645
    %855 = vmatpush.bf16.msra.mxu0 %v642
    %856 = vmatpush.bf16.msra.mxu0 %v639
    %857 = vmatpush.bf16.msra.mxu0 %v636
    %858 = vmatpush.bf16.msra.mxu0 %v633
    %859 = vmatpush.bf16.msra.mxu0 %v630
    %860 = vmatpush.bf16.msra.mxu0 %v627
    %861 = vmatmul.bf16.gmra.mxu0 %v838
    %v862 = vpop.f32.mrf.mxu0
    %v863 = vadd.f32 0.0, %v862
    %v864 = vpop.f32.mrf.mxu0
    %v865 = vadd.f32 0.0, %v864
    %866 = vdwg.mxu0
    %867 = vmatpush.bf16.msra.mxu0 %v649
    %868 = vmatpush.bf16.msra.mxu0 %v646
    %869 = vmatpush.bf16.msra.mxu0 %v643
    %870 = vmatpush.bf16.msra.mxu0 %v640
    %871 = vmatpush.bf16.msra.mxu0 %v637
    %872 = vmatpush.bf16.msra.mxu0 %v634
    %873 = vmatpush.bf16.msra.mxu0 %v631
    %874 = vmatpush.bf16.msra.mxu0 %v628
    %875 = vmatmul.bf16.gmra.mxu0 %v838
    %v876 = vpop.f32.mrf.mxu0
    %v877 = vadd.f32 0.0, %v876
    %v878 = vpop.f32.mrf.mxu0
    %v879 = vadd.f32 0.0, %v878
    %880 = vdwg.mxu0
    %v881 = vadd.f32 %v832, %v849
    %v882 = vadd.f32 %v835, %v851
    %v883 = vxor.u32 %v881, 2147483648
    %v884 = vxor.u32 %v882, 2147483648
    %v885 = vmul.f32 %v883, 1.442695
    %v886 = vpow.pop %v885
    %v887 = vmul.f32 %v884, 1.442695
    %v888 = vpow.pop %v887
    %v889 = vadd.f32 %v886, 1.0
    %v890 = vadd.f32 %v888, 1.0
    %v891 = vrcp.pop %v889
    %v892 = vmul.f32 %v889, %v891
    %v893 = vsub.f32 1.0, %v892
    %v894 = vmul.f32 %v891, %v893
    %v895 = vadd.f32 %v891, %v894
    %vm896 = vweird.f32 %v889
    %vm897 = vweird.f32 %v891
    %vm898 = vmor %vm896, %vm897
    %v899 = vsel %vm898, %v891, %v895
    %v900 = vand.u32 2147483647, %v889
    %vm901 = vcmp.eq.f32.partialorder %v900, 8.507059e+37
    %v902 = vand.u32 %v889, 2147483648
    %v903 = vor.u32 1.1754944e-38, %v902
    %v904 = vsel %vm901, %v903, %v899
    %v905 = vmul.f32 1.0, %v904
    %v906 = vrcp.pop %v890
    %v907 = vmul.f32 %v890, %v906
    %v908 = vsub.f32 1.0, %v907
    %v909 = vmul.f32 %v906, %v908
    %v910 = vadd.f32 %v906, %v909
    %vm911 = vweird.f32 %v890
    %vm912 = vweird.f32 %v906
    %vm913 = vmor %vm911, %vm912
    %v914 = vsel %vm913, %v906, %v910
    %v915 = vand.u32 2147483647, %v890
    %vm916 = vcmp.eq.f32.partialorder %v915, 8.507059e+37
    %v917 = vand.u32 %v890, 2147483648
    %v918 = vor.u32 1.1754944e-38, %v917
    %v919 = vsel %vm916, %v918, %v914
    %v920 = vmul.f32 1.0, %v919
    %v921 = vadd.f32 %v833, %v863
    %v922 = vadd.f32 %v836, %v865
    %v923 = vxor.u32 %v921, 2147483648
    %v924 = vxor.u32 %v922, 2147483648
    %v925 = vmul.f32 %v923, 1.442695
    %v926 = vpow.pop %v925
    %v927 = vmul.f32 %v924, 1.442695
    %v928 = vpow.pop %v927
    %v929 = vadd.f32 %v926, 1.0
    %v930 = vadd.f32 %v928, 1.0
    %v931 = vrcp.pop %v929
    %v932 = vmul.f32 %v929, %v931
    %v933 = vsub.f32 1.0, %v932
    %v934 = vmul.f32 %v931, %v933
    %v935 = vadd.f32 %v931, %v934
    %vm936 = vweird.f32 %v929
    %vm937 = vweird.f32 %v931
    %vm938 = vmor %vm936, %vm937
    %v939 = vsel %vm938, %v931, %v935
    %v940 = vand.u32 2147483647, %v929
    %vm941 = vcmp.eq.f32.partialorder %v940, 8.507059e+37
    %v942 = vand.u32 %v929, 2147483648
    %v943 = vor.u32 1.1754944e-38, %v942
    %v944 = vsel %vm941, %v943, %v939
    %v945 = vmul.f32 1.0, %v944
    %v946 = vrcp.pop %v930
    %v947 = vmul.f32 %v930, %v946
    %v948 = vsub.f32 1.0, %v947
    %v949 = vmul.f32 %v946, %v948
    %v950 = vadd.f32 %v946, %v949
    %vm951 = vweird.f32 %v930
    %vm952 = vweird.f32 %v946
    %vm953 = vmor %vm951, %vm952
    %v954 = vsel %vm953, %v946, %v950
    %v955 = vand.u32 2147483647, %v930
    %vm956 = vcmp.eq.f32.partialorder %v955, 8.507059e+37
    %v957 = vand.u32 %v930, 2147483648
    %v958 = vor.u32 1.1754944e-38, %v957
    %v959 = vsel %vm956, %v958, %v954
    %v960 = vmul.f32 1.0, %v959
    %v961 = vadd.f32 %v877, %v797
    %v962 = vadd.f32 %v879, %v797
    %v963 = vmul.f32 %v905, %v961
    %v964 = vmul.f32 %v920, %v962
    %v965 = vadd.f32 %v834, %v963
    %v966 = vadd.f32 %v837, %v964
    %v967 = vtanh.pop %v965
    %v968 = vtanh.pop %v966
    %v969 = vsub.f32 1.0, %v945
    %v970 = vsub.f32 1.0, %v960
    %v971 = vmul.f32 %v969, %v967
    %v972 = vmul.f32 %v970, %v968
    %v973 = vmul.f32 %v945, %v827
    %v974 = vmul.f32 %v960, %v828
    %v975 = vadd.f32 %v971, %v973
    %v976 = vadd.f32 %v972, %v974
    %vm977 = vcmp.gt.s32.totalorder %v499, 1
    %vm978 = vcmp.gt.s32.totalorder %v500, 1
    %v979 = vsel %vm977, 1, 0
    %v980 = vsel %vm978, 1, 0
    %981 = vset.pattern.permute.xlu0 0
    %982 = vperm.xlu0 %981, %v979
    %v983 = vpop.permute.xlu0 %982
    %984 = vset.pattern.permute.xlu0 0
    %985 = vperm.xlu0 %984, %v980
    %v986 = vpop.permute.xlu0 %985
    %vm987 = vcmp.eq.s32.totalorder %v983, 1
    %vm988 = vcmp.eq.s32.totalorder %v986, 1
    %v989 = vsel %vm987, %v975, 0.0
    %v990 = vsel %vm988, %v976, 0.0
    %v991 = vadd.f32 %v829, %v989
    %v992 = vadd.f32 %v830, %v990
    %v993 = vsel %vm987, %v975, %v827
    %v994 = vsel %vm988, %v976, %v828
    %s995 = scalar_lea.vmem [#allocation2], 96
    %v996 = vld [vmem:[%s995] sm:$0xff]
    %v997 = vld [vmem:[%s995 + $0x8] sm:$0xff]
    %v998 = vld [vmem:[%s995 + $0x10] sm:$0xff]
    %v999 = vld [vmem:[%s995 + $0x18] sm:$0xff]
    %v1000 = vld [vmem:[%s995 + $0x20] sm:$0xff]
    %v1001 = vld [vmem:[%s995 + $0x28] sm:$0xff]
    %v1002 = vpack.c.bf16 %v994, %v993
    %1003 = vmatpush.bf16.msra.mxu0 %v647
    %1004 = vmatpush.bf16.msra.mxu0 %v644
    %1005 = vmatpush.bf16.msra.mxu0 %v641
    %1006 = vmatpush.bf16.msra.mxu0 %v638
    %1007 = vmatpush.bf16.msra.mxu0 %v635
    %1008 = vmatpush.bf16.msra.mxu0 %v632
    %1009 = vmatpush.bf16.msra.mxu0 %v629
    %1010 = vmatpush.bf16.msra.mxu0 %v626
    %1011 = vmatmul.bf16.gmra.mxu0 %v1002
    %v1012 = vpop.f32.mrf.mxu0
    %v1013 = vadd.f32 0.0, %v1012
    %v1014 = vpop.f32.mrf.mxu0
    %v1015 = vadd.f32 0.0, %v1014
    %1016 = vdwg.mxu0
    %1017 = vmatpush.bf16.msra.mxu0 %v648
    %1018 = vmatpush.bf16.msra.mxu0 %v645
    %1019 = vmatpush.bf16.msra.mxu0 %v642
    %1020 = vmatpush.bf16.msra.mxu0 %v639
    %1021 = vmatpush.bf16.msra.mxu0 %v636
    %1022 = vmatpush.bf16.msra.mxu0 %v633
    %1023 = vmatpush.bf16.msra.mxu0 %v630
    %1024 = vmatpush.bf16.msra.mxu0 %v627
    %1025 = vmatmul.bf16.gmra.mxu0 %v1002
    %v1026 = vpop.f32.mrf.mxu0
    %v1027 = vadd.f32 0.0, %v1026
    %v1028 = vpop.f32.mrf.mxu0
    %v1029 = vadd.f32 0.0, %v1028
    %1030 = vdwg.mxu0
    %1031 = vmatpush.bf16.msra.mxu0 %v649
    %1032 = vmatpush.bf16.msra.mxu0 %v646
    %1033 = vmatpush.bf16.msra.mxu0 %v643
    %1034 = vmatpush.bf16.msra.mxu0 %v640
    %1035 = vmatpush.bf16.msra.mxu0 %v637
    %1036 = vmatpush.bf16.msra.mxu0 %v634
    %1037 = vmatpush.bf16.msra.mxu0 %v631
    %1038 = vmatpush.bf16.msra.mxu0 %v628
    %1039 = vmatmul.bf16.gmra.mxu0 %v1002
    %v1040 = vpop.f32.mrf.mxu0
    %v1041 = vadd.f32 0.0, %v1040
    %v1042 = vpop.f32.mrf.mxu0
    %v1043 = vadd.f32 0.0, %v1042
    %1044 = vdwg.mxu0
    %v1045 = vadd.f32 %v996, %v1013
    %v1046 = vadd.f32 %v999, %v1015
    %v1047 = vxor.u32 %v1045, 2147483648
    %v1048 = vxor.u32 %v1046, 2147483648
    %v1049 = vmul.f32 %v1047, 1.442695
    %v1050 = vpow.pop %v1049
    %v1051 = vmul.f32 %v1048, 1.442695
    %v1052 = vpow.pop %v1051
    %v1053 = vadd.f32 %v1050, 1.0
    %v1054 = vadd.f32 %v1052, 1.0
    %v1055 = vrcp.pop %v1053
    %v1056 = vmul.f32 %v1053, %v1055
    %v1057 = vsub.f32 1.0, %v1056
    %v1058 = vmul.f32 %v1055, %v1057
    %v1059 = vadd.f32 %v1055, %v1058
    %vm1060 = vweird.f32 %v1053
    %vm1061 = vweird.f32 %v1055
    %vm1062 = vmor %vm1060, %vm1061
    %v1063 = vsel %vm1062, %v1055, %v1059
    %v1064 = vand.u32 2147483647, %v1053
    %vm1065 = vcmp.eq.f32.partialorder %v1064, 8.507059e+37
    %v1066 = vand.u32 %v1053, 2147483648
    %v1067 = vor.u32 1.1754944e-38, %v1066
    %v1068 = vsel %vm1065, %v1067, %v1063
    %v1069 = vmul.f32 1.0, %v1068
    %v1070 = vrcp.pop %v1054
    %v1071 = vmul.f32 %v1054, %v1070
    %v1072 = vsub.f32 1.0, %v1071
    %v1073 = vmul.f32 %v1070, %v1072
    %v1074 = vadd.f32 %v1070, %v1073
    %vm1075 = vweird.f32 %v1054
    %vm1076 = vweird.f32 %v1070
    %vm1077 = vmor %vm1075, %vm1076
    %v1078 = vsel %vm1077, %v1070, %v1074
    %v1079 = vand.u32 2147483647, %v1054
    %vm1080 = vcmp.eq.f32.partialorder %v1079, 8.507059e+37
    %v1081 = vand.u32 %v1054, 2147483648
    %v1082 = vor.u32 1.1754944e-38, %v1081
    %v1083 = vsel %vm1080, %v1082, %v1078
    %v1084 = vmul.f32 1.0, %v1083
    %v1085 = vadd.f32 %v997, %v1027
    %v1086 = vadd.f32 %v1000, %v1029
    %v1087 = vxor.u32 %v1085, 2147483648
    %v1088 = vxor.u32 %v1086, 2147483648
    %v1089 = vmul.f32 %v1087, 1.442695
    %v1090 = vpow.pop %v1089
    %v1091 = vmul.f32 %v1088, 1.442695
    %v1092 = vpow.pop %v1091
    %v1093 = vadd.f32 %v1090, 1.0
    %v1094 = vadd.f32 %v1092, 1.0
    %v1095 = vrcp.pop %v1093
    %v1096 = vmul.f32 %v1093, %v1095
    %v1097 = vsub.f32 1.0, %v1096
    %v1098 = vmul.f32 %v1095, %v1097
    %v1099 = vadd.f32 %v1095, %v1098
    %vm1100 = vweird.f32 %v1093
    %vm1101 = vweird.f32 %v1095
    %vm1102 = vmor %vm1100, %vm1101
    %v1103 = vsel %vm1102, %v1095, %v1099
    %v1104 = vand.u32 2147483647, %v1093
    %vm1105 = vcmp.eq.f32.partialorder %v1104, 8.507059e+37
    %v1106 = vand.u32 %v1093, 2147483648
    %v1107 = vor.u32 1.1754944e-38, %v1106
    %v1108 = vsel %vm1105, %v1107, %v1103
    %v1109 = vmul.f32 1.0, %v1108
    %v1110 = vrcp.pop %v1094
    %v1111 = vmul.f32 %v1094, %v1110
    %v1112 = vsub.f32 1.0, %v1111
    %v1113 = vmul.f32 %v1110, %v1112
    %v1114 = vadd.f32 %v1110, %v1113
    %vm1115 = vweird.f32 %v1094
    %vm1116 = vweird.f32 %v1110
    %vm1117 = vmor %vm1115, %vm1116
    %v1118 = vsel %vm1117, %v1110, %v1114
    %v1119 = vand.u32 2147483647, %v1094
    %vm1120 = vcmp.eq.f32.partialorder %v1119, 8.507059e+37
    %v1121 = vand.u32 %v1094, 2147483648
    %v1122 = vor.u32 1.1754944e-38, %v1121
    %v1123 = vsel %vm1120, %v1122, %v1118
    %v1124 = vmul.f32 1.0, %v1123
    %v1125 = vadd.f32 %v1041, %v797
    %v1126 = vadd.f32 %v1043, %v797
    %v1127 = vmul.f32 %v1069, %v1125
    %v1128 = vmul.f32 %v1084, %v1126
    %v1129 = vadd.f32 %v998, %v1127
    %v1130 = vadd.f32 %v1001, %v1128
    %v1131 = vtanh.pop %v1129
    %v1132 = vtanh.pop %v1130
    %v1133 = vsub.f32 1.0, %v1109
    %v1134 = vsub.f32 1.0, %v1124
    %v1135 = vmul.f32 %v1133, %v1131
    %v1136 = vmul.f32 %v1134, %v1132
    %v1137 = vmul.f32 %v1109, %v993
    %v1138 = vmul.f32 %v1124, %v994
    %v1139 = vadd.f32 %v1135, %v1137
    %v1140 = vadd.f32 %v1136, %v1138
    %vm1141 = vcmp.gt.s32.totalorder %v499, 2
    %vm1142 = vcmp.gt.s32.totalorder %v500, 2
    %v1143 = vsel %vm1141, 1, 0
    %v1144 = vsel %vm1142, 1, 0
    %1145 = vset.pattern.permute.xlu0 0
    %1146 = vperm.xlu0 %1145, %v1143
    %v1147 = vpop.permute.xlu0 %1146
    %1148 = vset.pattern.permute.xlu0 0
    %1149 = vperm.xlu0 %1148, %v1144
    %v1150 = vpop.permute.xlu0 %1149
    %vm1151 = vcmp.eq.s32.totalorder %v1147, 1
    %vm1152 = vcmp.eq.s32.totalorder %v1150, 1
    %v1153 = vsel %vm1151, %v1139, 0.0
    %v1154 = vsel %vm1152, %v1140, 0.0
    %v1155 = vadd.f32 %v991, %v1153
    %v1156 = vadd.f32 %v992, %v1154
    %v1157 = vsel %vm1151, %v1139, %v993
    %v1158 = vsel %vm1152, %v1140, %v994
    %s1159 = scalar_lea.vmem [#allocation2], 144
    %v1160 = vld [vmem:[%s1159] sm:$0xff]
    %v1161 = vld [vmem:[%s1159 + $0x8] sm:$0xff]
    %v1162 = vld [vmem:[%s1159 + $0x10] sm:$0xff]
    %v1163 = vld [vmem:[%s1159 + $0x18] sm:$0xff]
    %v1164 = vld [vmem:[%s1159 + $0x20] sm:$0xff]
    %v1165 = vld [vmem:[%s1159 + $0x28] sm:$0xff]
    %v1166 = vpack.c.bf16 %v1158, %v1157
    %1167 = vmatpush.bf16.msra.mxu0 %v647
    %1168 = vmatpush.bf16.msra.mxu0 %v644
    %1169 = vmatpush.bf16.msra.mxu0 %v641
    %1170 = vmatpush.bf16.msra.mxu0 %v638
    %1171 = vmatpush.bf16.msra.mxu0 %v635
    %1172 = vmatpush.bf16.msra.mxu0 %v632
    %1173 = vmatpush.bf16.msra.mxu0 %v629
    %1174 = vmatpush.bf16.msra.mxu0 %v626
    %1175 = vmatmul.bf16.gmra.mxu0 %v1166
    %v1176 = vpop.f32.mrf.mxu0
    %v1177 = vadd.f32 0.0, %v1176
    %v1178 = vpop.f32.mrf.mxu0
    %v1179 = vadd.f32 0.0, %v1178
    %1180 = vdwg.mxu0
    %1181 = vmatpush.bf16.msra.mxu0 %v648
    %1182 = vmatpush.bf16.msra.mxu0 %v645
    %1183 = vmatpush.bf16.msra.mxu0 %v642
    %1184 = vmatpush.bf16.msra.mxu0 %v639
    %1185 = vmatpush.bf16.msra.mxu0 %v636
    %1186 = vmatpush.bf16.msra.mxu0 %v633
    %1187 = vmatpush.bf16.msra.mxu0 %v630
    %1188 = vmatpush.bf16.msra.mxu0 %v627
    %1189 = vmatmul.bf16.gmra.mxu0 %v1166
    %v1190 = vpop.f32.mrf.mxu0
    %v1191 = vadd.f32 0.0, %v1190
    %v1192 = vpop.f32.mrf.mxu0
    %v1193 = vadd.f32 0.0, %v1192
    %1194 = vdwg.mxu0
    %1195 = vmatpush.bf16.msra.mxu0 %v649
    %1196 = vmatpush.bf16.msra.mxu0 %v646
    %1197 = vmatpush.bf16.msra.mxu0 %v643
    %1198 = vmatpush.bf16.msra.mxu0 %v640
    %1199 = vmatpush.bf16.msra.mxu0 %v637
    %1200 = vmatpush.bf16.msra.mxu0 %v634
    %1201 = vmatpush.bf16.msra.mxu0 %v631
    %1202 = vmatpush.bf16.msra.mxu0 %v628
    %1203 = vmatmul.bf16.gmra.mxu0 %v1166
    %v1204 = vpop.f32.mrf.mxu0
    %v1205 = vadd.f32 0.0, %v1204
    %v1206 = vpop.f32.mrf.mxu0
    %v1207 = vadd.f32 0.0, %v1206
    %1208 = vdwg.mxu0
    %v1209 = vadd.f32 %v1160, %v1177
    %v1210 = vadd.f32 %v1163, %v1179
    %v1211 = vxor.u32 %v1209, 2147483648
    %v1212 = vxor.u32 %v1210, 2147483648
    %v1213 = vmul.f32 %v1211, 1.442695
    %v1214 = vpow.pop %v1213
    %v1215 = vmul.f32 %v1212, 1.442695
    %v1216 = vpow.pop %v1215
    %v1217 = vadd.f32 %v1214, 1.0
    %v1218 = vadd.f32 %v1216, 1.0
    %v1219 = vrcp.pop %v1217
    %v1220 = vmul.f32 %v1217, %v1219
    %v1221 = vsub.f32 1.0, %v1220
    %v1222 = vmul.f32 %v1219, %v1221
    %v1223 = vadd.f32 %v1219, %v1222
    %vm1224 = vweird.f32 %v1217
    %vm1225 = vweird.f32 %v1219
    %vm1226 = vmor %vm1224, %vm1225
    %v1227 = vsel %vm1226, %v1219, %v1223
    %v1228 = vand.u32 2147483647, %v1217
    %vm1229 = vcmp.eq.f32.partialorder %v1228, 8.507059e+37
    %v1230 = vand.u32 %v1217, 2147483648
    %v1231 = vor.u32 1.1754944e-38, %v1230
    %v1232 = vsel %vm1229, %v1231, %v1227
    %v1233 = vmul.f32 1.0, %v1232
    %v1234 = vrcp.pop %v1218
    %v1235 = vmul.f32 %v1218, %v1234
    %v1236 = vsub.f32 1.0, %v1235
    %v1237 = vmul.f32 %v1234, %v1236
    %v1238 = vadd.f32 %v1234, %v1237
    %vm1239 = vweird.f32 %v1218
    %vm1240 = vweird.f32 %v1234
    %vm1241 = vmor %vm1239, %vm1240
    %v1242 = vsel %vm1241, %v1234, %v1238
    %v1243 = vand.u32 2147483647, %v1218
    %vm1244 = vcmp.eq.f32.partialorder %v1243, 8.507059e+37
    %v1245 = vand.u32 %v1218, 2147483648
    %v1246 = vor.u32 1.1754944e-38, %v1245
    %v1247 = vsel %vm1244, %v1246, %v1242
    %v1248 = vmul.f32 1.0, %v1247
    %v1249 = vadd.f32 %v1161, %v1191
    %v1250 = vadd.f32 %v1164, %v1193
    %v1251 = vxor.u32 %v1249, 2147483648
    %v1252 = vxor.u32 %v1250, 2147483648
    %v1253 = vmul.f32 %v1251, 1.442695
    %v1254 = vpow.pop %v1253
    %v1255 = vmul.f32 %v1252, 1.442695
    %v1256 = vpow.pop %v1255
    %v1257 = vadd.f32 %v1254, 1.0
    %v1258 = vadd.f32 %v1256, 1.0
    %v1259 = vrcp.pop %v1257
    %v1260 = vmul.f32 %v1257, %v1259
    %v1261 = vsub.f32 1.0, %v1260
    %v1262 = vmul.f32 %v1259, %v1261
    %v1263 = vadd.f32 %v1259, %v1262
    %vm1264 = vweird.f32 %v1257
    %vm1265 = vweird.f32 %v1259
    %vm1266 = vmor %vm1264, %vm1265
    %v1267 = vsel %vm1266, %v1259, %v1263
    %v1268 = vand.u32 2147483647, %v1257
    %vm1269 = vcmp.eq.f32.partialorder %v1268, 8.507059e+37
    %v1270 = vand.u32 %v1257, 2147483648
    %v1271 = vor.u32 1.1754944e-38, %v1270
    %v1272 = vsel %vm1269, %v1271, %v1267
    %v1273 = vmul.f32 1.0, %v1272
    %v1274 = vrcp.pop %v1258
    %v1275 = vmul.f32 %v1258, %v1274
    %v1276 = vsub.f32 1.0, %v1275
    %v1277 = vmul.f32 %v1274, %v1276
    %v1278 = vadd.f32 %v1274, %v1277
    %vm1279 = vweird.f32 %v1258
    %vm1280 = vweird.f32 %v1274
    %vm1281 = vmor %vm1279, %vm1280
    %v1282 = vsel %vm1281, %v1274, %v1278
    %v1283 = vand.u32 2147483647, %v1258
    %vm1284 = vcmp.eq.f32.partialorder %v1283, 8.507059e+37
    %v1285 = vand.u32 %v1258, 2147483648
    %v1286 = vor.u32 1.1754944e-38, %v1285
    %v1287 = vsel %vm1284, %v1286, %v1282
    %v1288 = vmul.f32 1.0, %v1287
    %v1289 = vadd.f32 %v1205, %v797
    %v1290 = vadd.f32 %v1207, %v797
    %v1291 = vmul.f32 %v1233, %v1289
    %v1292 = vmul.f32 %v1248, %v1290
    %v1293 = vadd.f32 %v1162, %v1291
    %v1294 = vadd.f32 %v1165, %v1292
    %v1295 = vtanh.pop %v1293
    %v1296 = vtanh.pop %v1294
    %v1297 = vsub.f32 1.0, %v1273
    %v1298 = vsub.f32 1.0, %v1288
    %v1299 = vmul.f32 %v1297, %v1295
    %v1300 = vmul.f32 %v1298, %v1296
    %v1301 = vmul.f32 %v1273, %v1157
    %v1302 = vmul.f32 %v1288, %v1158
    %v1303 = vadd.f32 %v1299, %v1301
    %v1304 = vadd.f32 %v1300, %v1302
    %vm1305 = vcmp.gt.s32.totalorder %v499, 3
    %vm1306 = vcmp.gt.s32.totalorder %v500, 3
    %v1307 = vsel %vm1305, 1, 0
    %v1308 = vsel %vm1306, 1, 0
    %1309 = vset.pattern.permute.xlu0 0
    %1310 = vperm.xlu0 %1309, %v1307
    %v1311 = vpop.permute.xlu0 %1310
    %1312 = vset.pattern.permute.xlu0 0
    %1313 = vperm.xlu0 %1312, %v1308
    %v1314 = vpop.permute.xlu0 %1313
    %vm1315 = vcmp.eq.s32.totalorder %v1311, 1
    %vm1316 = vcmp.eq.s32.totalorder %v1314, 1
    %v1317 = vsel %vm1315, %v1303, 0.0
    %v1318 = vsel %vm1316, %v1304, 0.0
    %v1319 = vadd.f32 %v1155, %v1317
    %v1320 = vadd.f32 %v1156, %v1318
    %v1321 = vsel %vm1315, %v1303, %v1157
    %v1322 = vsel %vm1316, %v1304, %v1158
    %s1323 = scalar_lea.vmem [#allocation2], 192
    %v1324 = vld [vmem:[%s1323] sm:$0xff]
    %v1325 = vld [vmem:[%s1323 + $0x8] sm:$0xff]
    %v1326 = vld [vmem:[%s1323 + $0x10] sm:$0xff]
    %v1327 = vld [vmem:[%s1323 + $0x18] sm:$0xff]
    %v1328 = vld [vmem:[%s1323 + $0x20] sm:$0xff]
    %v1329 = vld [vmem:[%s1323 + $0x28] sm:$0xff]
    %v1330 = vpack.c.bf16 %v1322, %v1321
    %1331 = vmatpush.bf16.msra.mxu0 %v647
    %1332 = vmatpush.bf16.msra.mxu0 %v644
    %1333 = vmatpush.bf16.msra.mxu0 %v641
    %1334 = vmatpush.bf16.msra.mxu0 %v638
    %1335 = vmatpush.bf16.msra.mxu0 %v635
    %1336 = vmatpush.bf16.msra.mxu0 %v632
    %1337 = vmatpush.bf16.msra.mxu0 %v629
    %1338 = vmatpush.bf16.msra.mxu0 %v626
    %1339 = vmatmul.bf16.gmra.mxu0 %v1330
    %v1340 = vpop.f32.mrf.mxu0
    %v1341 = vadd.f32 0.0, %v1340
    %v1342 = vpop.f32.mrf.mxu0
    %v1343 = vadd.f32 0.0, %v1342
    %1344 = vdwg.mxu0
    %1345 = vmatpush.bf16.msra.mxu0 %v648
    %1346 = vmatpush.bf16.msra.mxu0 %v645
    %1347 = vmatpush.bf16.msra.mxu0 %v642
    %1348 = vmatpush.bf16.msra.mxu0 %v639
    %1349 = vmatpush.bf16.msra.mxu0 %v636
    %1350 = vmatpush.bf16.msra.mxu0 %v633
    %1351 = vmatpush.bf16.msra.mxu0 %v630
    %1352 = vmatpush.bf16.msra.mxu0 %v627
    %1353 = vmatmul.bf16.gmra.mxu0 %v1330
    %v1354 = vpop.f32.mrf.mxu0
    %v1355 = vadd.f32 0.0, %v1354
    %v1356 = vpop.f32.mrf.mxu0
    %v1357 = vadd.f32 0.0, %v1356
    %1358 = vdwg.mxu0
    %1359 = vmatpush.bf16.msra.mxu0 %v649
    %1360 = vmatpush.bf16.msra.mxu0 %v646
    %1361 = vmatpush.bf16.msra.mxu0 %v643
    %1362 = vmatpush.bf16.msra.mxu0 %v640
    %1363 = vmatpush.bf16.msra.mxu0 %v637
    %1364 = vmatpush.bf16.msra.mxu0 %v634
    %1365 = vmatpush.bf16.msra.mxu0 %v631
    %1366 = vmatpush.bf16.msra.mxu0 %v628
    %1367 = vmatmul.bf16.gmra.mxu0 %v1330
    %v1368 = vpop.f32.mrf.mxu0
    %v1369 = vadd.f32 0.0, %v1368
    %v1370 = vpop.f32.mrf.mxu0
    %v1371 = vadd.f32 0.0, %v1370
    %1372 = vdwg.mxu0
    %v1373 = vadd.f32 %v1324, %v1341
    %v1374 = vadd.f32 %v1327, %v1343
    %v1375 = vxor.u32 %v1373, 2147483648
    %v1376 = vxor.u32 %v1374, 2147483648
    %v1377 = vmul.f32 %v1375, 1.442695
    %v1378 = vpow.pop %v1377
    %v1379 = vmul.f32 %v1376, 1.442695
    %v1380 = vpow.pop %v1379
    %v1381 = vadd.f32 %v1378, 1.0
    %v1382 = vadd.f32 %v1380, 1.0
    %v1383 = vrcp.pop %v1381
    %v1384 = vmul.f32 %v1381, %v1383
    %v1385 = vsub.f32 1.0, %v1384
    %v1386 = vmul.f32 %v1383, %v1385
    %v1387 = vadd.f32 %v1383, %v1386
    %vm1388 = vweird.f32 %v1381
    %vm1389 = vweird.f32 %v1383
    %vm1390 = vmor %vm1388, %vm1389
    %v1391 = vsel %vm1390, %v1383, %v1387
    %v1392 = vand.u32 2147483647, %v1381
    %vm1393 = vcmp.eq.f32.partialorder %v1392, 8.507059e+37
    %v1394 = vand.u32 %v1381, 2147483648
    %v1395 = vor.u32 1.1754944e-38, %v1394
    %v1396 = vsel %vm1393, %v1395, %v1391
    %v1397 = vmul.f32 1.0, %v1396
    %v1398 = vrcp.pop %v1382
    %v1399 = vmul.f32 %v1382, %v1398
    %v1400 = vsub.f32 1.0, %v1399
    %v1401 = vmul.f32 %v1398, %v1400
    %v1402 = vadd.f32 %v1398, %v1401
    %vm1403 = vweird.f32 %v1382
    %vm1404 = vweird.f32 %v1398
    %vm1405 = vmor %vm1403, %vm1404
    %v1406 = vsel %vm1405, %v1398, %v1402
    %v1407 = vand.u32 2147483647, %v1382
    %vm1408 = vcmp.eq.f32.partialorder %v1407, 8.507059e+37
    %v1409 = vand.u32 %v1382, 2147483648
    %v1410 = vor.u32 1.1754944e-38, %v1409
    %v1411 = vsel %vm1408, %v1410, %v1406
    %v1412 = vmul.f32 1.0, %v1411
    %v1413 = vadd.f32 %v1325, %v1355
    %v1414 = vadd.f32 %v1328, %v1357
    %v1415 = vxor.u32 %v1413, 2147483648
    %v1416 = vxor.u32 %v1414, 2147483648
    %v1417 = vmul.f32 %v1415, 1.442695
    %v1418 = vpow.pop %v1417
    %v1419 = vmul.f32 %v1416, 1.442695
    %v1420 = vpow.pop %v1419
    %v1421 = vadd.f32 %v1418, 1.0
    %v1422 = vadd.f32 %v1420, 1.0
    %v1423 = vrcp.pop %v1421
    %v1424 = vmul.f32 %v1421, %v1423
    %v1425 = vsub.f32 1.0, %v1424
    %v1426 = vmul.f32 %v1423, %v1425
    %v1427 = vadd.f32 %v1423, %v1426
    %vm1428 = vweird.f32 %v1421
    %vm1429 = vweird.f32 %v1423
    %vm1430 = vmor %vm1428, %vm1429
    %v1431 = vsel %vm1430, %v1423, %v1427
    %v1432 = vand.u32 2147483647, %v1421
    %vm1433 = vcmp.eq.f32.partialorder %v1432, 8.507059e+37
    %v1434 = vand.u32 %v1421, 2147483648
    %v1435 = vor.u32 1.1754944e-38, %v1434
    %v1436 = vsel %vm1433, %v1435, %v1431
    %v1437 = vmul.f32 1.0, %v1436
    %v1438 = vrcp.pop %v1422
    %v1439 = vmul.f32 %v1422, %v1438
    %v1440 = vsub.f32 1.0, %v1439
    %v1441 = vmul.f32 %v1438, %v1440
    %v1442 = vadd.f32 %v1438, %v1441
    %vm1443 = vweird.f32 %v1422
    %vm1444 = vweird.f32 %v1438
    %vm1445 = vmor %vm1443, %vm1444
    %v1446 = vsel %vm1445, %v1438, %v1442
    %v1447 = vand.u32 2147483647, %v1422
    %vm1448 = vcmp.eq.f32.partialorder %v1447, 8.507059e+37
    %v1449 = vand.u32 %v1422, 2147483648
    %v1450 = vor.u32 1.1754944e-38, %v1449
    %v1451 = vsel %vm1448, %v1450, %v1446
    %v1452 = vmul.f32 1.0, %v1451
    %v1453 = vadd.f32 %v1369, %v797
    %v1454 = vadd.f32 %v1371, %v797
    %v1455 = vmul.f32 %v1397, %v1453
    %v1456 = vmul.f32 %v1412, %v1454
    %v1457 = vadd.f32 %v1326, %v1455
    %v1458 = vadd.f32 %v1329, %v1456
    %v1459 = vtanh.pop %v1457
    %v1460 = vtanh.pop %v1458
    %v1461 = vsub.f32 1.0, %v1437
    %v1462 = vsub.f32 1.0, %v1452
    %v1463 = vmul.f32 %v1461, %v1459
    %v1464 = vmul.f32 %v1462, %v1460
    %v1465 = vmul.f32 %v1437, %v1321
    %v1466 = vmul.f32 %v1452, %v1322
    %v1467 = vadd.f32 %v1463, %v1465
    %v1468 = vadd.f32 %v1464, %v1466
    %vm1469 = vcmp.gt.s32.totalorder %v499, 4
    %vm1470 = vcmp.gt.s32.totalorder %v500, 4
    %v1471 = vsel %vm1469, 1, 0
    %v1472 = vsel %vm1470, 1, 0
    %1473 = vset.pattern.permute.xlu0 0
    %1474 = vperm.xlu0 %1473, %v1471
    %v1475 = vpop.permute.xlu0 %1474
    %1476 = vset.pattern.permute.xlu0 0
    %1477 = vperm.xlu0 %1476, %v1472
    %v1478 = vpop.permute.xlu0 %1477
    %vm1479 = vcmp.eq.s32.totalorder %v1475, 1
    %vm1480 = vcmp.eq.s32.totalorder %v1478, 1
    %v1481 = vsel %vm1479, %v1467, 0.0
    %v1482 = vsel %vm1480, %v1468, 0.0
    %v1483 = vadd.f32 %v1319, %v1481
    %v1484 = vadd.f32 %v1320, %v1482
    %v1485 = vsel %vm1479, %v1467, %v1321
    %v1486 = vsel %vm1480, %v1468, %v1322
    %s1487 = scalar_lea.vmem [#allocation2], 240
    %v1488 = vld [vmem:[%s1487] sm:$0xff]
    %v1489 = vld [vmem:[%s1487 + $0x8] sm:$0xff]
    %v1490 = vld [vmem:[%s1487 + $0x10] sm:$0xff]
    %v1491 = vld [vmem:[%s1487 + $0x18] sm:$0xff]
    %v1492 = vld [vmem:[%s1487 + $0x20] sm:$0xff]
    %v1493 = vld [vmem:[%s1487 + $0x28] sm:$0xff]
    %v1494 = vpack.c.bf16 %v1486, %v1485
    %1495 = vmatpush.bf16.msra.mxu0 %v647
    %1496 = vmatpush.bf16.msra.mxu0 %v644
    %1497 = vmatpush.bf16.msra.mxu0 %v641
    %1498 = vmatpush.bf16.msra.mxu0 %v638
    %1499 = vmatpush.bf16.msra.mxu0 %v635
    %1500 = vmatpush.bf16.msra.mxu0 %v632
    %1501 = vmatpush.bf16.msra.mxu0 %v629
    %1502 = vmatpush.bf16.msra.mxu0 %v626
    %1503 = vmatmul.bf16.gmra.mxu0 %v1494
    %v1504 = vpop.f32.mrf.mxu0
    %v1505 = vadd.f32 0.0, %v1504
    %v1506 = vpop.f32.mrf.mxu0
    %v1507 = vadd.f32 0.0, %v1506
    %1508 = vdwg.mxu0
    %1509 = vmatpush.bf16.msra.mxu0 %v648
    %1510 = vmatpush.bf16.msra.mxu0 %v645
    %1511 = vmatpush.bf16.msra.mxu0 %v642
    %1512 = vmatpush.bf16.msra.mxu0 %v639
    %1513 = vmatpush.bf16.msra.mxu0 %v636
    %1514 = vmatpush.bf16.msra.mxu0 %v633
    %1515 = vmatpush.bf16.msra.mxu0 %v630
    %1516 = vmatpush.bf16.msra.mxu0 %v627
    %1517 = vmatmul.bf16.gmra.mxu0 %v1494
    %v1518 = vpop.f32.mrf.mxu0
    %v1519 = vadd.f32 0.0, %v1518
    %v1520 = vpop.f32.mrf.mxu0
    %v1521 = vadd.f32 0.0, %v1520
    %1522 = vdwg.mxu0
    %1523 = vmatpush.bf16.msra.mxu0 %v649
    %1524 = vmatpush.bf16.msra.mxu0 %v646
    %1525 = vmatpush.bf16.msra.mxu0 %v643
    %1526 = vmatpush.bf16.msra.mxu0 %v640
    %1527 = vmatpush.bf16.msra.mxu0 %v637
    %1528 = vmatpush.bf16.msra.mxu0 %v634
    %1529 = vmatpush.bf16.msra.mxu0 %v631
    %1530 = vmatpush.bf16.msra.mxu0 %v628
    %1531 = vmatmul.bf16.gmra.mxu0 %v1494
    %v1532 = vpop.f32.mrf.mxu0
    %v1533 = vadd.f32 0.0, %v1532
    %v1534 = vpop.f32.mrf.mxu0
    %v1535 = vadd.f32 0.0, %v1534
    %1536 = vdwg.mxu0
    %v1537 = vadd.f32 %v1488, %v1505
    %v1538 = vadd.f32 %v1491, %v1507
    %v1539 = vxor.u32 %v1537, 2147483648
    %v1540 = vxor.u32 %v1538, 2147483648
    %v1541 = vmul.f32 %v1539, 1.442695
    %v1542 = vpow.pop %v1541
    %v1543 = vmul.f32 %v1540, 1.442695
    %v1544 = vpow.pop %v1543
    %v1545 = vadd.f32 %v1542, 1.0
    %v1546 = vadd.f32 %v1544, 1.0
    %v1547 = vrcp.pop %v1545
    %v1548 = vmul.f32 %v1545, %v1547
    %v1549 = vsub.f32 1.0, %v1548
    %v1550 = vmul.f32 %v1547, %v1549
    %v1551 = vadd.f32 %v1547, %v1550
    %vm1552 = vweird.f32 %v1545
    %vm1553 = vweird.f32 %v1547
    %vm1554 = vmor %vm1552, %vm1553
    %v1555 = vsel %vm1554, %v1547, %v1551
    %v1556 = vand.u32 2147483647, %v1545
    %vm1557 = vcmp.eq.f32.partialorder %v1556, 8.507059e+37
    %v1558 = vand.u32 %v1545, 2147483648
    %v1559 = vor.u32 1.1754944e-38, %v1558
    %v1560 = vsel %vm1557, %v1559, %v1555
    %v1561 = vmul.f32 1.0, %v1560
    %v1562 = vrcp.pop %v1546
    %v1563 = vmul.f32 %v1546, %v1562
    %v1564 = vsub.f32 1.0, %v1563
    %v1565 = vmul.f32 %v1562, %v1564
    %v1566 = vadd.f32 %v1562, %v1565
    %vm1567 = vweird.f32 %v1546
    %vm1568 = vweird.f32 %v1562
    %vm1569 = vmor %vm1567, %vm1568
    %v1570 = vsel %vm1569, %v1562, %v1566
    %v1571 = vand.u32 2147483647, %v1546
    %vm1572 = vcmp.eq.f32.partialorder %v1571, 8.507059e+37
    %v1573 = vand.u32 %v1546, 2147483648
    %v1574 = vor.u32 1.1754944e-38, %v1573
    %v1575 = vsel %vm1572, %v1574, %v1570
    %v1576 = vmul.f32 1.0, %v1575
    %v1577 = vadd.f32 %v1489, %v1519
    %v1578 = vadd.f32 %v1492, %v1521
    %v1579 = vxor.u32 %v1577, 2147483648
    %v1580 = vxor.u32 %v1578, 2147483648
    %v1581 = vmul.f32 %v1579, 1.442695
    %v1582 = vpow.pop %v1581
    %v1583 = vmul.f32 %v1580, 1.442695
    %v1584 = vpow.pop %v1583
    %v1585 = vadd.f32 %v1582, 1.0
    %v1586 = vadd.f32 %v1584, 1.0
    %v1587 = vrcp.pop %v1585
    %v1588 = vmul.f32 %v1585, %v1587
    %v1589 = vsub.f32 1.0, %v1588
    %v1590 = vmul.f32 %v1587, %v1589
    %v1591 = vadd.f32 %v1587, %v1590
    %vm1592 = vweird.f32 %v1585
    %vm1593 = vweird.f32 %v1587
    %vm1594 = vmor %vm1592, %vm1593
    %v1595 = vsel %vm1594, %v1587, %v1591
    %v1596 = vand.u32 2147483647, %v1585
    %vm1597 = vcmp.eq.f32.partialorder %v1596, 8.507059e+37
    %v1598 = vand.u32 %v1585, 2147483648
    %v1599 = vor.u32 1.1754944e-38, %v1598
    %v1600 = vsel %vm1597, %v1599, %v1595
    %v1601 = vmul.f32 1.0, %v1600
    %v1602 = vrcp.pop %v1586
    %v1603 = vmul.f32 %v1586, %v1602
    %v1604 = vsub.f32 1.0, %v1603
    %v1605 = vmul.f32 %v1602, %v1604
    %v1606 = vadd.f32 %v1602, %v1605
    %vm1607 = vweird.f32 %v1586
    %vm1608 = vweird.f32 %v1602
    %vm1609 = vmor %vm1607, %vm1608
    %v1610 = vsel %vm1609, %v1602, %v1606
    %v1611 = vand.u32 2147483647, %v1586
    %vm1612 = vcmp.eq.f32.partialorder %v1611, 8.507059e+37
    %v1613 = vand.u32 %v1586, 2147483648
    %v1614 = vor.u32 1.1754944e-38, %v1613
    %v1615 = vsel %vm1612, %v1614, %v1610
    %v1616 = vmul.f32 1.0, %v1615
    %v1617 = vadd.f32 %v1533, %v797
    %v1618 = vadd.f32 %v1535, %v797
    %v1619 = vmul.f32 %v1561, %v1617
    %v1620 = vmul.f32 %v1576, %v1618
    %v1621 = vadd.f32 %v1490, %v1619
    %v1622 = vadd.f32 %v1493, %v1620
    %v1623 = vtanh.pop %v1621
    %v1624 = vtanh.pop %v1622
    %v1625 = vsub.f32 1.0, %v1601
    %v1626 = vsub.f32 1.0, %v1616
    %v1627 = vmul.f32 %v1625, %v1623
    %v1628 = vmul.f32 %v1626, %v1624
    %v1629 = vmul.f32 %v1601, %v1485
    %v1630 = vmul.f32 %v1616, %v1486
    %v1631 = vadd.f32 %v1627, %v1629
    %v1632 = vadd.f32 %v1628, %v1630
    %vm1633 = vcmp.gt.s32.totalorder %v499, 5
    %vm1634 = vcmp.gt.s32.totalorder %v500, 5
    %v1635 = vsel %vm1633, 1, 0
    %v1636 = vsel %vm1634, 1, 0
    %1637 = vset.pattern.permute.xlu0 0
    %1638 = vperm.xlu0 %1637, %v1635
    %v1639 = vpop.permute.xlu0 %1638
    %1640 = vset.pattern.permute.xlu0 0
    %1641 = vperm.xlu0 %1640, %v1636
    %v1642 = vpop.permute.xlu0 %1641
    %vm1643 = vcmp.eq.s32.totalorder %v1639, 1
    %vm1644 = vcmp.eq.s32.totalorder %v1642, 1
    %v1645 = vsel %vm1643, %v1631, 0.0
    %v1646 = vsel %vm1644, %v1632, 0.0
    %v1647 = vadd.f32 %v1483, %v1645
    %v1648 = vadd.f32 %v1484, %v1646
    %v1649 = vsel %vm1643, %v1631, %v1485
    %v1650 = vsel %vm1644, %v1632, %v1486
    %s1651 = scalar_lea.vmem [#allocation2], 288
    %v1652 = vld [vmem:[%s1651] sm:$0xff]
    %v1653 = vld [vmem:[%s1651 + $0x8] sm:$0xff]
    %v1654 = vld [vmem:[%s1651 + $0x10] sm:$0xff]
    %v1655 = vld [vmem:[%s1651 + $0x18] sm:$0xff]
    %v1656 = vld [vmem:[%s1651 + $0x20] sm:$0xff]
    %v1657 = vld [vmem:[%s1651 + $0x28] sm:$0xff]
    %v1658 = vpack.c.bf16 %v1650, %v1649
    %1659 = vmatpush.bf16.msra.mxu0 %v647
    %1660 = vmatpush.bf16.msra.mxu0 %v644
    %1661 = vmatpush.bf16.msra.mxu0 %v641
    %1662 = vmatpush.bf16.msra.mxu0 %v638
    %1663 = vmatpush.bf16.msra.mxu0 %v635
    %1664 = vmatpush.bf16.msra.mxu0 %v632
    %1665 = vmatpush.bf16.msra.mxu0 %v629
    %1666 = vmatpush.bf16.msra.mxu0 %v626
    %1667 = vmatmul.bf16.gmra.mxu0 %v1658
    %v1668 = vpop.f32.mrf.mxu0
    %v1669 = vadd.f32 0.0, %v1668
    %v1670 = vpop.f32.mrf.mxu0
    %v1671 = vadd.f32 0.0, %v1670
    %1672 = vdwg.mxu0
    %1673 = vmatpush.bf16.msra.mxu0 %v648
    %1674 = vmatpush.bf16.msra.mxu0 %v645
    %1675 = vmatpush.bf16.msra.mxu0 %v642
    %1676 = vmatpush.bf16.msra.mxu0 %v639
    %1677 = vmatpush.bf16.msra.mxu0 %v636
    %1678 = vmatpush.bf16.msra.mxu0 %v633
    %1679 = vmatpush.bf16.msra.mxu0 %v630
    %1680 = vmatpush.bf16.msra.mxu0 %v627
    %1681 = vmatmul.bf16.gmra.mxu0 %v1658
    %v1682 = vpop.f32.mrf.mxu0
    %v1683 = vadd.f32 0.0, %v1682
    %v1684 = vpop.f32.mrf.mxu0
    %v1685 = vadd.f32 0.0, %v1684
    %1686 = vdwg.mxu0
    %1687 = vmatpush.bf16.msra.mxu0 %v649
    %1688 = vmatpush.bf16.msra.mxu0 %v646
    %1689 = vmatpush.bf16.msra.mxu0 %v643
    %1690 = vmatpush.bf16.msra.mxu0 %v640
    %1691 = vmatpush.bf16.msra.mxu0 %v637
    %1692 = vmatpush.bf16.msra.mxu0 %v634
    %1693 = vmatpush.bf16.msra.mxu0 %v631
    %1694 = vmatpush.bf16.msra.mxu0 %v628
    %1695 = vmatmul.bf16.gmra.mxu0 %v1658
    %v1696 = vpop.f32.mrf.mxu0
    %v1697 = vadd.f32 0.0, %v1696
    %v1698 = vpop.f32.mrf.mxu0
    %v1699 = vadd.f32 0.0, %v1698
    %1700 = vdwg.mxu0
    %v1701 = vadd.f32 %v1652, %v1669
    %v1702 = vadd.f32 %v1655, %v1671
    %v1703 = vxor.u32 %v1701, 2147483648
    %v1704 = vxor.u32 %v1702, 2147483648
    %v1705 = vmul.f32 %v1703, 1.442695
    %v1706 = vpow.pop %v1705
    %v1707 = vmul.f32 %v1704, 1.442695
    %v1708 = vpow.pop %v1707
    %v1709 = vadd.f32 %v1706, 1.0
    %v1710 = vadd.f32 %v1708, 1.0
    %v1711 = vrcp.pop %v1709
    %v1712 = vmul.f32 %v1709, %v1711
    %v1713 = vsub.f32 1.0, %v1712
    %v1714 = vmul.f32 %v1711, %v1713
    %v1715 = vadd.f32 %v1711, %v1714
    %vm1716 = vweird.f32 %v1709
    %vm1717 = vweird.f32 %v1711
    %vm1718 = vmor %vm1716, %vm1717
    %v1719 = vsel %vm1718, %v1711, %v1715
    %v1720 = vand.u32 2147483647, %v1709
    %vm1721 = vcmp.eq.f32.partialorder %v1720, 8.507059e+37
    %v1722 = vand.u32 %v1709, 2147483648
    %v1723 = vor.u32 1.1754944e-38, %v1722
    %v1724 = vsel %vm1721, %v1723, %v1719
    %v1725 = vmul.f32 1.0, %v1724
    %v1726 = vrcp.pop %v1710
    %v1727 = vmul.f32 %v1710, %v1726
    %v1728 = vsub.f32 1.0, %v1727
    %v1729 = vmul.f32 %v1726, %v1728
    %v1730 = vadd.f32 %v1726, %v1729
    %vm1731 = vweird.f32 %v1710
    %vm1732 = vweird.f32 %v1726
    %vm1733 = vmor %vm1731, %vm1732
    %v1734 = vsel %vm1733, %v1726, %v1730
    %v1735 = vand.u32 2147483647, %v1710
    %vm1736 = vcmp.eq.f32.partialorder %v1735, 8.507059e+37
    %v1737 = vand.u32 %v1710, 2147483648
    %v1738 = vor.u32 1.1754944e-38, %v1737
    %v1739 = vsel %vm1736, %v1738, %v1734
    %v1740 = vmul.f32 1.0, %v1739
    %v1741 = vadd.f32 %v1653, %v1683
    %v1742 = vadd.f32 %v1656, %v1685
    %v1743 = vxor.u32 %v1741, 2147483648
    %v1744 = vxor.u32 %v1742, 2147483648
    %v1745 = vmul.f32 %v1743, 1.442695
    %v1746 = vpow.pop %v1745
    %v1747 = vmul.f32 %v1744, 1.442695
    %v1748 = vpow.pop %v1747
    %v1749 = vadd.f32 %v1746, 1.0
    %v1750 = vadd.f32 %v1748, 1.0
    %v1751 = vrcp.pop %v1749
    %v1752 = vmul.f32 %v1749, %v1751
    %v1753 = vsub.f32 1.0, %v1752
    %v1754 = vmul.f32 %v1751, %v1753
    %v1755 = vadd.f32 %v1751, %v1754
    %vm1756 = vweird.f32 %v1749
    %vm1757 = vweird.f32 %v1751
    %vm1758 = vmor %vm1756, %vm1757
    %v1759 = vsel %vm1758, %v1751, %v1755
    %v1760 = vand.u32 2147483647, %v1749
    %vm1761 = vcmp.eq.f32.partialorder %v1760, 8.507059e+37
    %v1762 = vand.u32 %v1749, 2147483648
    %v1763 = vor.u32 1.1754944e-38, %v1762
    %v1764 = vsel %vm1761, %v1763, %v1759
    %v1765 = vmul.f32 1.0, %v1764
    %v1766 = vrcp.pop %v1750
    %v1767 = vmul.f32 %v1750, %v1766
    %v1768 = vsub.f32 1.0, %v1767
    %v1769 = vmul.f32 %v1766, %v1768
    %v1770 = vadd.f32 %v1766, %v1769
    %vm1771 = vweird.f32 %v1750
    %vm1772 = vweird.f32 %v1766
    %vm1773 = vmor %vm1771, %vm1772
    %v1774 = vsel %vm1773, %v1766, %v1770
    %v1775 = vand.u32 2147483647, %v1750
    %vm1776 = vcmp.eq.f32.partialorder %v1775, 8.507059e+37
    %v1777 = vand.u32 %v1750, 2147483648
    %v1778 = vor.u32 1.1754944e-38, %v1777
    %v1779 = vsel %vm1776, %v1778, %v1774
    %v1780 = vmul.f32 1.0, %v1779
    %v1781 = vadd.f32 %v1697, %v797
    %v1782 = vadd.f32 %v1699, %v797
    %v1783 = vmul.f32 %v1725, %v1781
    %v1784 = vmul.f32 %v1740, %v1782
    %v1785 = vadd.f32 %v1654, %v1783
    %v1786 = vadd.f32 %v1657, %v1784
    %v1787 = vtanh.pop %v1785
    %v1788 = vtanh.pop %v1786
    %v1789 = vsub.f32 1.0, %v1765
    %v1790 = vsub.f32 1.0, %v1780
    %v1791 = vmul.f32 %v1789, %v1787
    %v1792 = vmul.f32 %v1790, %v1788
    %v1793 = vmul.f32 %v1765, %v1649
    %v1794 = vmul.f32 %v1780, %v1650
    %v1795 = vadd.f32 %v1791, %v1793
    %v1796 = vadd.f32 %v1792, %v1794
    %vm1797 = vcmp.gt.s32.totalorder %v499, 6
    %vm1798 = vcmp.gt.s32.totalorder %v500, 6
    %v1799 = vsel %vm1797, 1, 0
    %v1800 = vsel %vm1798, 1, 0
    %1801 = vset.pattern.permute.xlu0 0
    %1802 = vperm.xlu0 %1801, %v1799
    %v1803 = vpop.permute.xlu0 %1802
    %1804 = vset.pattern.permute.xlu0 0
    %1805 = vperm.xlu0 %1804, %v1800
    %v1806 = vpop.permute.xlu0 %1805
    %vm1807 = vcmp.eq.s32.totalorder %v1803, 1
    %vm1808 = vcmp.eq.s32.totalorder %v1806, 1
    %v1809 = vsel %vm1807, %v1795, 0.0
    %v1810 = vsel %vm1808, %v1796, 0.0
    %v1811 = vadd.f32 %v1647, %v1809
    %v1812 = vadd.f32 %v1648, %v1810
    %v1813 = vsel %vm1807, %v1795, %v1649
    %v1814 = vsel %vm1808, %v1796, %v1650
    %s1815 = scalar_lea.vmem [#allocation2], 336
    %v1816 = vld [vmem:[%s1815] sm:$0xff]
    %v1817 = vld [vmem:[%s1815 + $0x8] sm:$0xff]
    %v1818 = vld [vmem:[%s1815 + $0x10] sm:$0xff]
    %v1819 = vld [vmem:[%s1815 + $0x18] sm:$0xff]
    %v1820 = vld [vmem:[%s1815 + $0x20] sm:$0xff]
    %v1821 = vld [vmem:[%s1815 + $0x28] sm:$0xff]
    %v1822 = vpack.c.bf16 %v1814, %v1813
    %1823 = vmatpush.bf16.msra.mxu0 %v647
    %1824 = vmatpush.bf16.msra.mxu0 %v644
    %1825 = vmatpush.bf16.msra.mxu0 %v641
    %1826 = vmatpush.bf16.msra.mxu0 %v638
    %1827 = vmatpush.bf16.msra.mxu0 %v635
    %1828 = vmatpush.bf16.msra.mxu0 %v632
    %1829 = vmatpush.bf16.msra.mxu0 %v629
    %1830 = vmatpush.bf16.msra.mxu0 %v626
    %1831 = vmatmul.bf16.gmra.mxu0 %v1822
    %v1832 = vpop.f32.mrf.mxu0
    %v1833 = vadd.f32 0.0, %v1832
    %v1834 = vpop.f32.mrf.mxu0
    %v1835 = vadd.f32 0.0, %v1834
    %1836 = vdwg.mxu0
    %1837 = vmatpush.bf16.msra.mxu0 %v648
    %1838 = vmatpush.bf16.msra.mxu0 %v645
    %1839 = vmatpush.bf16.msra.mxu0 %v642
    %1840 = vmatpush.bf16.msra.mxu0 %v639
    %1841 = vmatpush.bf16.msra.mxu0 %v636
    %1842 = vmatpush.bf16.msra.mxu0 %v633
    %1843 = vmatpush.bf16.msra.mxu0 %v630
    %1844 = vmatpush.bf16.msra.mxu0 %v627
    %1845 = vmatmul.bf16.gmra.mxu0 %v1822
    %v1846 = vpop.f32.mrf.mxu0
    %v1847 = vadd.f32 0.0, %v1846
    %v1848 = vpop.f32.mrf.mxu0
    %v1849 = vadd.f32 0.0, %v1848
    %1850 = vdwg.mxu0
    %1851 = vmatpush.bf16.msra.mxu0 %v649
    %1852 = vmatpush.bf16.msra.mxu0 %v646
    %1853 = vmatpush.bf16.msra.mxu0 %v643
    %1854 = vmatpush.bf16.msra.mxu0 %v640
    %1855 = vmatpush.bf16.msra.mxu0 %v637
    %1856 = vmatpush.bf16.msra.mxu0 %v634
    %1857 = vmatpush.bf16.msra.mxu0 %v631
    %1858 = vmatpush.bf16.msra.mxu0 %v628
    %1859 = vmatmul.bf16.gmra.mxu0 %v1822
    %v1860 = vpop.f32.mrf.mxu0
    %v1861 = vadd.f32 0.0, %v1860
    %v1862 = vpop.f32.mrf.mxu0
    %v1863 = vadd.f32 0.0, %v1862
    %1864 = vdwg.mxu0
    %v1865 = vadd.f32 %v1816, %v1833
    %v1866 = vadd.f32 %v1819, %v1835
    %v1867 = vxor.u32 %v1865, 2147483648
    %v1868 = vxor.u32 %v1866, 2147483648
    %v1869 = vmul.f32 %v1867, 1.442695
    %v1870 = vpow.pop %v1869
    %v1871 = vmul.f32 %v1868, 1.442695
    %v1872 = vpow.pop %v1871
    %v1873 = vadd.f32 %v1870, 1.0
    %v1874 = vadd.f32 %v1872, 1.0
    %v1875 = vrcp.pop %v1873
    %v1876 = vmul.f32 %v1873, %v1875
    %v1877 = vsub.f32 1.0, %v1876
    %v1878 = vmul.f32 %v1875, %v1877
    %v1879 = vadd.f32 %v1875, %v1878
    %vm1880 = vweird.f32 %v1873
    %vm1881 = vweird.f32 %v1875
    %vm1882 = vmor %vm1880, %vm1881
    %v1883 = vsel %vm1882, %v1875, %v1879
    %v1884 = vand.u32 2147483647, %v1873
    %vm1885 = vcmp.eq.f32.partialorder %v1884, 8.507059e+37
    %v1886 = vand.u32 %v1873, 2147483648
    %v1887 = vor.u32 1.1754944e-38, %v1886
    %v1888 = vsel %vm1885, %v1887, %v1883
    %v1889 = vmul.f32 1.0, %v1888
    %v1890 = vrcp.pop %v1874
    %v1891 = vmul.f32 %v1874, %v1890
    %v1892 = vsub.f32 1.0, %v1891
    %v1893 = vmul.f32 %v1890, %v1892
    %v1894 = vadd.f32 %v1890, %v1893
    %vm1895 = vweird.f32 %v1874
    %vm1896 = vweird.f32 %v1890
    %vm1897 = vmor %vm1895, %vm1896
    %v1898 = vsel %vm1897, %v1890, %v1894
    %v1899 = vand.u32 2147483647, %v1874
    %vm1900 = vcmp.eq.f32.partialorder %v1899, 8.507059e+37
    %v1901 = vand.u32 %v1874, 2147483648
    %v1902 = vor.u32 1.1754944e-38, %v1901
    %v1903 = vsel %vm1900, %v1902, %v1898
    %v1904 = vmul.f32 1.0, %v1903
    %v1905 = vadd.f32 %v1817, %v1847
    %v1906 = vadd.f32 %v1820, %v1849
    %v1907 = vxor.u32 %v1905, 2147483648
    %v1908 = vxor.u32 %v1906, 2147483648
    %v1909 = vmul.f32 %v1907, 1.442695
    %v1910 = vpow.pop %v1909
    %v1911 = vmul.f32 %v1908, 1.442695
    %v1912 = vpow.pop %v1911
    %v1913 = vadd.f32 %v1910, 1.0
    %v1914 = vadd.f32 %v1912, 1.0
    %v1915 = vrcp.pop %v1913
    %v1916 = vmul.f32 %v1913, %v1915
    %v1917 = vsub.f32 1.0, %v1916
    %v1918 = vmul.f32 %v1915, %v1917
    %v1919 = vadd.f32 %v1915, %v1918
    %vm1920 = vweird.f32 %v1913
    %vm1921 = vweird.f32 %v1915
    %vm1922 = vmor %vm1920, %vm1921
    %v1923 = vsel %vm1922, %v1915, %v1919
    %v1924 = vand.u32 2147483647, %v1913
    %vm1925 = vcmp.eq.f32.partialorder %v1924, 8.507059e+37
    %v1926 = vand.u32 %v1913, 2147483648
    %v1927 = vor.u32 1.1754944e-38, %v1926
    %v1928 = vsel %vm1925, %v1927, %v1923
    %v1929 = vmul.f32 1.0, %v1928
    %v1930 = vrcp.pop %v1914
    %v1931 = vmul.f32 %v1914, %v1930
    %v1932 = vsub.f32 1.0, %v1931
    %v1933 = vmul.f32 %v1930, %v1932
    %v1934 = vadd.f32 %v1930, %v1933
    %vm1935 = vweird.f32 %v1914
    %vm1936 = vweird.f32 %v1930
    %vm1937 = vmor %vm1935, %vm1936
    %v1938 = vsel %vm1937, %v1930, %v1934
    %v1939 = vand.u32 2147483647, %v1914
    %vm1940 = vcmp.eq.f32.partialorder %v1939, 8.507059e+37
    %v1941 = vand.u32 %v1914, 2147483648
    %v1942 = vor.u32 1.1754944e-38, %v1941
    %v1943 = vsel %vm1940, %v1942, %v1938
    %v1944 = vmul.f32 1.0, %v1943
    %v1945 = vadd.f32 %v1861, %v797
    %v1946 = vadd.f32 %v1863, %v797
    %v1947 = vmul.f32 %v1889, %v1945
    %v1948 = vmul.f32 %v1904, %v1946
    %v1949 = vadd.f32 %v1818, %v1947
    %v1950 = vadd.f32 %v1821, %v1948
    %v1951 = vtanh.pop %v1949
    %v1952 = vtanh.pop %v1950
    %v1953 = vsub.f32 1.0, %v1929
    %v1954 = vsub.f32 1.0, %v1944
    %v1955 = vmul.f32 %v1953, %v1951
    %v1956 = vmul.f32 %v1954, %v1952
    %v1957 = vmul.f32 %v1929, %v1813
    %v1958 = vmul.f32 %v1944, %v1814
    %v1959 = vadd.f32 %v1955, %v1957
    %v1960 = vadd.f32 %v1956, %v1958
    %vm1961 = vcmp.gt.s32.totalorder %v499, 7
    %vm1962 = vcmp.gt.s32.totalorder %v500, 7
    %v1963 = vsel %vm1961, 1, 0
    %v1964 = vsel %vm1962, 1, 0
    %1965 = vset.pattern.permute.xlu0 0
    %1966 = vperm.xlu0 %1965, %v1963
    %v1967 = vpop.permute.xlu0 %1966
    %1968 = vset.pattern.permute.xlu0 0
    %1969 = vperm.xlu0 %1968, %v1964
    %v1970 = vpop.permute.xlu0 %1969
    %vm1971 = vcmp.eq.s32.totalorder %v1967, 1
    %vm1972 = vcmp.eq.s32.totalorder %v1970, 1
    %v1973 = vsel %vm1971, %v1959, 0.0
    %v1974 = vsel %vm1972, %v1960, 0.0
    %v1975 = vadd.f32 %v1811, %v1973
    %v1976 = vadd.f32 %v1812, %v1974
    %1978 = vset.pattern.permute.xlu0 0
    %1979 = vperm.xlu0 %1978, %v505
    %v1980 = vpop.permute.xlu0 %1979
    %1983 = vset.pattern.permute.xlu0 0
    %1984 = vperm.xlu0 %1983, %v506
    %v1985 = vpop.permute.xlu0 %1984
    %v1987 = vmul.f32 %v1975, %v1980
    %v1988 = vmul.f32 %v1976, %v1985
    %1989 = vst [vmem:[#allocation9] sm:$0xff] %v1987
    %1990 = vst [vmem:[#allocation9 + $0x8] sm:$0xff] %v1988
    // Predicated region
    $region38: #{tpu_custom_call.1} parent=1 // pred_check
      _
    $region39: #{tpu_custom_call.1} parent=1 // pred_check_branch
      %1992 = sbr.rel (0) target = $region41
    $region40: #{tpu_custom_call.1} parent=1 // pred_region
      %1994 = vsyncadd [#allocation5], 0
      %s1995 = sshll.u32 [#allocation9], 4
      %s1996 = int_to_ptr.vmem [resolvable:$true] %s1995
      %s1997 = sshll.u32 %s6, 4
      %s1998 = int_to_ptr.hbm [resolvable:$true] %s1997
      %2003 = dma.vmem_to_hbm [thread:$0]  %s1996, 256, %s1998, [#allocation5], 128, 128, 8
    $region41: #{tpu_custom_call.1} parent=1 // pred_fallthru
      _
    // Predicated region
    $region42: #{tpu_custom_call.1} parent=1 // pred_check
      _
    $region43: #{tpu_custom_call.1} parent=1 // pred_check_branch
      %2005 = sbr.rel (0) target = $region45
    $region44: #{tpu_custom_call.1} parent=1 // pred_region
      %2007 = dma.done [#allocation5], 256
    $region45: #{tpu_custom_call.1} parent=1 // pred_fallthru
      _
    %2008 = vsyncpa [#allocation4], 1
    %2009 = vsyncpa [#allocation7], 1
    %2010 = vsyncpa [#allocation5], 1

</llo_original>
